<compile_context>
chip_gen: v6e
topology: v6e:2x2x1
jax: 0.10.0
libtpu: 0.0.40
codegen_flags: <defaults>
</compile_context>

<pallas_src>
import math
import jax
import jax.numpy as jnp
from jax.experimental import pallas as pl
from jax.experimental.pallas import tpu as pltpu

# --- problem sizes (small, consistent with the module) -----------------------
B = 2              # batch
S_T = 8            # x_t (query) sequence length
S_C = 8            # x_cond sequence length
S_K = S_C + S_T    # combined key/value length
HIDDEN = 32
NUM_HEADS = 4
HEAD_DIM = HIDDEN // NUM_HEADS
FF = 4 * HIDDEN
LN_EPS = 1e-5

BH = B * HIDDEN            # 64  : batch packed on lanes
NSEG = B * NUM_HEADS       # 8   : (head, batch) softmax segments of S_K lanes
LK = NSEG * S_K            # 128 : score lanes, l = h*(B*S_K) + b*S_K + k


# --- in-kernel helpers --------------------------------------------------------
def _erf(x):
    # Abramowitz & Stegun 7.1.26 polynomial (|err| < 1.5e-7); exact divide.
    a1, a2, a3, a4, a5 = (0.254829592, -0.284496736, 1.421413741,
                          -1.453152027, 1.061405429)
    p = 0.3275911
    sgn = jnp.where(x >= 0.0, 1.0, -1.0)
    z = jnp.abs(x)
    t = 1.0 / (1.0 + p * z)
    poly = t * (a1 + t * (a2 + t * (a3 + t * (a4 + t * a5))))
    return sgn * (1.0 - poly * jnp.exp(-z * z))


def _gelu_exact(x):
    # PyTorch nn.GELU() default (erf form): 0.5*x*(1+erf(x/sqrt(2)))
    return 0.5 * x * (1.0 + _erf(x * 0.7071067811865476))


def _layernorm_packed(x, w, b):
    # x: (rows, B*HIDDEN) with batch packed on lanes; LayerNorm over each
    # HIDDEN-wide lane group, exact f32.
    parts = []
    for i in range(B):
        xi = x[:, i * HIDDEN:(i + 1) * HIDDEN]
        mu = jnp.mean(xi, axis=-1, keepdims=True)
        xc = xi - mu
        var = jnp.mean(xc * xc, axis=-1, keepdims=True)
        parts.append(xc * jax.lax.rsqrt(var + LN_EPS))
    return jnp.concatenate(parts, axis=-1) * w + b


def _bf16(x):
    return x.astype(jnp.bfloat16)


# --- the fused kernel (single grid step; whole batch on lanes) ----------------
def transformer_layer_kernel(
    xt_ref, xT_ref, xrows_ref,
    wq_ref, bq_ref, wk_ref, bk_ref, wv_ref, bv_ref,
    ktmask_ref, vmask_ref,
    wo_ref, bo_ref, w1_ref, b1_ref, w2_ref, b2_ref,
    ln1w_ref, ln1b_ref, ln2w_ref, ln2b_ref,
    out_ref,
):
    xt = xt_ref[...]                                     # (S_T, B*H) f32
    xt_bf = _bf16(xt)

    # Q with batch packed on lanes; 1/sqrt(head_dim) folded into wq/bq.
    q = jnp.dot(xt_bf, wq_ref[...],
                preferred_element_type=jnp.float32) + bq_ref[...]           # (8, 64)

    # K^T directly via block-diag Wk @ x^T: no in-kernel transpose.
    kt = jnp.dot(wk_ref[...], xT_ref[...],
                 preferred_element_type=jnp.float32) + bk_ref[...]          # (64, 16)
    kt_big = jnp.concatenate([_bf16(kt)] * NSEG, axis=1) * ktmask_ref[...]  # (64, 128)

    # V rows (b*S_K+k, hd), then block-diag V (lane l = h*32 + b*16 + k).
    v = jnp.dot(xrows_ref[...], wv_ref[...],
                preferred_element_type=jnp.float32) + bv_ref[...]           # (32, 32)
    v_rep = jnp.concatenate([_bf16(v)] * NUM_HEADS, axis=0)                 # (128, 32)
    v_big = jnp.concatenate([v_rep] * B, axis=1) * vmask_ref[...]           # (128, 64)

    # Scores for every (batch, head) in one lane-dense matmul.
    s = jnp.dot(_bf16(q), kt_big, preferred_element_type=jnp.float32)       # (8, 128)
    # Softmax per 16-lane (head, batch) segment; the row-wide max is a valid
    # shift constant for every segment (softmax is shift-invariant), so a
    # single lane reduction replaces 8 per-segment maxes.
    e = jnp.exp(s - jnp.max(s, axis=-1, keepdims=True))
    e_bf = _bf16(e)
    num = jnp.dot(e_bf, v_big, preferred_element_type=jnp.float32)          # (8, 64)
    den = jnp.dot(e_bf, vmask_ref[...],
                  preferred_element_type=jnp.float32)                       # (8, 64)
    attn = num * pl.reciprocal(den, approx=True)         # heads lane-concatenated

    # Output projection (block-diag over batch).
    attn = jnp.dot(_bf16(attn), wo_ref[...],
                   preferred_element_type=jnp.float32) + bo_ref[...]        # (8, 64)

    # Residual + LayerNorm 1.
    y = _layernorm_packed(xt + attn, ln1w_ref[...], ln1b_ref[...])

    # Feed-forward: Linear -> GELU -> Linear (block-diag over batch).
    h = jnp.dot(_bf16(y), w1_ref[...],
                preferred_element_type=jnp.float32) + b1_ref[...]           # (8, 256)
    h = _gelu_exact(h)
    h = jnp.dot(_bf16(h), w2_ref[...],
                preferred_element_type=jnp.float32) + b2_ref[...]           # (8, 64)

    # Residual + LayerNorm 2 -> single lane-packed store.
    out_ref[...] = _layernorm_packed(y + h, ln2w_ref[...],
                                     ln2b_ref[...]).astype(out_ref.dtype)


# --- wrapper ------------------------------------------------------------------
def custom_transformer_layer(x_t, x_cond, kparams):
    # Wrapper-side layout prep (free at the XLA level): pre-concat the combined
    # sequence, pack batch onto lanes for x_t, and pre-transpose x so the
    # kernel never reshuffles activations across sublanes.
    x_comb = jnp.concatenate([x_cond, x_t], axis=1)                 # (B, S_K, H)
    xt_pk = x_t.transpose(1, 0, 2).reshape(S_T, BH)                 # (8, 64)  f32
    xT_st = _bf16(x_comb.transpose(0, 2, 1).reshape(BH, S_K))       # (64, 16) bf16
    x_rows = _bf16(x_comb.reshape(B * S_K, HIDDEN))                 # (32, 32) bf16

    inputs = (xt_pk, xT_st, x_rows) + tuple(kparams)

    def full_spec(a):
        shp = a.shape
        return pl.BlockSpec(shp, lambda *_: (0,) * len(shp))

    out = pl.pallas_call(
        transformer_layer_kernel,
        out_shape=jax.ShapeDtypeStruct((S_T, BH), jnp.float32),
        grid=(1,),
        in_specs=[full_spec(a) for a in inputs],
        out_specs=pl.BlockSpec((S_T, BH), lambda *_: (0, 0)),
        compiler_params=pltpu.CompilerParams(dimension_semantics=("arbitrary",)),
    )(*inputs)
    # (S_T, B*H) batch-on-lanes -> (B, S_T, H)
    return out.reshape(S_T, B, HIDDEN).transpose(1, 0, 2)


def prepare_params(raw):
    """Host-side layout: block-diagonal (over batch) [in, out] weights in bf16,
    batch-packed biases / LN params, and the attention block-diag masks."""
    (wq, wk, wv, bq, bk, bv, wo, bo, w1, b1, w2, b2,
     ln1w, ln1b, ln2w, ln2b) = raw
    scale = 1.0 / math.sqrt(HEAD_DIM)

    def blkdiag(block):
        r, c = block.shape
        out = jnp.zeros((B * r, B * c), jnp.float32)
        for i in range(B):
            out = out.at[i * r:(i + 1) * r, i * c:(i + 1) * c].set(block)
        return _bf16(out)

    def pk(vec):   # tile a per-feature vector across the batch lane groups
        return jnp.tile(vec, (B,)).reshape(1, -1).astype(jnp.float32)

    # masks: score lane l = h*(B*S_K) + b*S_K + k ; column c = b*H + h*HD + d
    c_idx = jnp.arange(BH)
    l_idx = jnp.arange(LK)
    b_c, h_c = c_idx // HIDDEN, (c_idx % HIDDEN) // HEAD_DIM
    h_l, b_l = l_idx // (B * S_K), (l_idx % (B * S_K)) // S_K
    kt_mask = _bf16((b_c[:, None] == b_l[None, :]) &
                    (h_c[:, None] == h_l[None, :]))                  # (64, 128)
    v_mask = kt_mask.T                                               # (128, 64)

    return (
        blkdiag((wq * scale).T), pk(bq * scale),                      # Q
        blkdiag(wk), jnp.tile(pk(bk).reshape(BH, 1), (1, S_K)),       # K^T
        _bf16(wv.T), bv.reshape(1, HIDDEN).astype(jnp.float32),       # V
        kt_mask, v_mask,
        blkdiag(wo.T), pk(bo),                                        # out-proj
        blkdiag(w1.T), pk(b1),                                        # FFN 1
        blkdiag(w2.T), pk(b2),                                        # FFN 2
        pk(ln1w), pk(ln1b), pk(ln2w), pk(ln2b),
    )


# --- pure-JAX reference (mirrors PyTorch semantics, f32) ----------------------
def reference(x_t, x_cond, raw):
    (wq, wk, wv, bq, bk, bv, wo, bo, w1, b1, w2, b2,
     ln1w, ln1b, ln2w, ln2b) = raw
    comb = jnp.concatenate([x_cond, x_t], axis=1)
    q = x_t @ wq.T + bq
    k = comb @ wk.T + bk
    v = comb @ wv.T + bv

    def split(x):
        return x.reshape(x.shape[0], x.shape[1], NUM_HEADS, HEAD_DIM).transpose(0, 2, 1, 3)

    qh, kh, vh = split(q), split(k), split(v)
    s = jnp.einsum('bhqd,bhkd->bhqk', qh, kh) / math.sqrt(HEAD_DIM)
    p = jax.nn.softmax(s, axis=-1)
    o = jnp.einsum('bhqk,bhkd->bhqd', p, vh).transpose(0, 2, 1, 3).reshape(B, S_T, HIDDEN)
    attn = o @ wo.T + bo

    def ln(x, w, b):
        mu = x.mean(-1, keepdims=True)
        var = ((x - mu) ** 2).mean(-1, keepdims=True)
        return (x - mu) / jnp.sqrt(var + LN_EPS) * w + b

    y = ln(x_t + attn, ln1w, ln1b)
    h = y @ w1.T + b1
    h = 0.5 * h * (1.0 + jax.scipy.special.erf(h / math.sqrt(2.0)))
    f = h @ w2.T + b2
    return ln(y + f, ln2w, ln2b)


if __name__ == "__main__":
    key = jax.random.PRNGKey(0)
    ks = jax.random.split(key, 16)

    def randn(k, shape, scale=0.1):
        return scale * jax.random.normal(k, shape, dtype=jnp.float32)

    x_t = jax.random.normal(ks[0], (B, S_T, HIDDEN), dtype=jnp.float32)
    x_cond = jax.random.normal(ks[1], (B, S_C, HIDDEN), dtype=jnp.float32)

    # deterministic synthetic parameters (shapes from nn.MultiheadAttention /
    # nn.LayerNorm / nn.Linear in __init__)
    in_proj_w = randn(ks[2], (3 * HIDDEN, HIDDEN))
    in_proj_b = randn(ks[3], (3 * HIDDEN,))
    wq, wk, wv = in_proj_w[:HIDDEN], in_proj_w[HIDDEN:2 * HIDDEN], in_proj_w[2 * HIDDEN:]
    bq, bk, bv = in_proj_b[:HIDDEN], in_proj_b[HIDDEN:2 * HIDDEN], in_proj_b[2 * HIDDEN:]
    wo = randn(ks[4], (HIDDEN, HIDDEN)); bo = randn(ks[5], (HIDDEN,))
    w1 = randn(ks[6], (FF, HIDDEN));     b1 = randn(ks[7], (FF,))
    w2 = randn(ks[8], (HIDDEN, FF));     b2 = randn(ks[9], (HIDDEN,))
    ln1w = 1.0 + randn(ks[10], (HIDDEN,), 0.05); ln1b = randn(ks[11], (HIDDEN,), 0.05)
    ln2w = 1.0 + randn(ks[12], (HIDDEN,), 0.05); ln2b = randn(ks[13], (HIDDEN,), 0.05)

    raw_params = (wq, wk, wv, bq, bk, bv, wo, bo, w1, b1, w2, b2,
                  ln1w, ln1b, ln2w, ln2b)
    kparams = prepare_params(raw_params)

    out = custom_transformer_layer(x_t, x_cond, kparams)
    out = jax.block_until_ready(out)

    ref = reference(x_t, x_cond, raw_params)
    err = float(jnp.max(jnp.abs(out - ref)))
    assert out.shape == (B, S_T, HIDDEN) and out.dtype == jnp.float32
    assert err < 5e-2, f"max abs error {err}"
    print("KERNEL_OK")
</pallas_src>

<mosaic_0001>
module attributes {stable_mosaic.version = 11 : i64} {
  func.func @transformer_layer_kernel(%arg0: i32, %arg1: memref<8x64xf32, #tpu.memory_space<vmem>>, %arg2: memref<64x16xbf16, #tpu.memory_space<vmem>>, %arg3: memref<32x32xbf16, #tpu.memory_space<vmem>>, %arg4: memref<64x64xbf16, #tpu.memory_space<vmem>>, %arg5: memref<1x64xf32, #tpu.memory_space<vmem>>, %arg6: memref<64x64xbf16, #tpu.memory_space<vmem>>, %arg7: memref<64x16xf32, #tpu.memory_space<vmem>>, %arg8: memref<32x32xbf16, #tpu.memory_space<vmem>>, %arg9: memref<1x32xf32, #tpu.memory_space<vmem>>, %arg10: memref<64x128xbf16, #tpu.memory_space<vmem>>, %arg11: memref<128x64xbf16, #tpu.memory_space<vmem>>, %arg12: memref<64x64xbf16, #tpu.memory_space<vmem>>, %arg13: memref<1x64xf32, #tpu.memory_space<vmem>>, %arg14: memref<64x256xbf16, #tpu.memory_space<vmem>>, %arg15: memref<1x256xf32, #tpu.memory_space<vmem>>, %arg16: memref<256x64xbf16, #tpu.memory_space<vmem>>, %arg17: memref<1x64xf32, #tpu.memory_space<vmem>>, %arg18: memref<1x64xf32, #tpu.memory_space<vmem>>, %arg19: memref<1x64xf32, #tpu.memory_space<vmem>>, %arg20: memref<1x64xf32, #tpu.memory_space<vmem>>, %arg21: memref<1x64xf32, #tpu.memory_space<vmem>>, %arg22: memref<8x64xf32, #tpu.memory_space<vmem>>) attributes {dimension_semantics = [#tpu.dimension_semantics<arbitrary>], iteration_bounds = array<i64: 1>, scalar_prefetch = 0 : i64, scratch_operands = 0 : i64, tpu.core_type = #tpu.core_type<tc>, window_params = [{pipeline_mode = #tpu.pipeline_mode<synchronous>, transform_indices = @transform_0, window_bounds = array<i64: 8, 64>}, {pipeline_mode = #tpu.pipeline_mode<synchronous>, transform_indices = @transform_1, window_bounds = array<i64: 64, 16>}, {pipeline_mode = #tpu.pipeline_mode<synchronous>, transform_indices = @transform_2, window_bounds = array<i64: 32, 32>}, {pipeline_mode = #tpu.pipeline_mode<synchronous>, transform_indices = @transform_3, window_bounds = array<i64: 64, 64>}, {pipeline_mode = #tpu.pipeline_mode<synchronous>, transform_indices = @transform_4, window_bounds = array<i64: 1, 64>}, {pipeline_mode = #tpu.pipeline_mode<synchronous>, transform_indices = @transform_5, window_bounds = array<i64: 64, 64>}, {pipeline_mode = #tpu.pipeline_mode<synchronous>, transform_indices = @transform_6, window_bounds = array<i64: 64, 16>}, {pipeline_mode = #tpu.pipeline_mode<synchronous>, transform_indices = @transform_7, window_bounds = array<i64: 32, 32>}, {pipeline_mode = #tpu.pipeline_mode<synchronous>, transform_indices = @transform_8, window_bounds = array<i64: 1, 32>}, {pipeline_mode = #tpu.pipeline_mode<synchronous>, transform_indices = @transform_9, window_bounds = array<i64: 64, 128>}, {pipeline_mode = #tpu.pipeline_mode<synchronous>, transform_indices = @transform_10, window_bounds = array<i64: 128, 64>}, {pipeline_mode = #tpu.pipeline_mode<synchronous>, transform_indices = @transform_11, window_bounds = array<i64: 64, 64>}, {pipeline_mode = #tpu.pipeline_mode<synchronous>, transform_indices = @transform_12, window_bounds = array<i64: 1, 64>}, {pipeline_mode = #tpu.pipeline_mode<synchronous>, transform_indices = @transform_13, window_bounds = array<i64: 64, 256>}, {pipeline_mode = #tpu.pipeline_mode<synchronous>, transform_indices = @transform_14, window_bounds = array<i64: 1, 256>}, {pipeline_mode = #tpu.pipeline_mode<synchronous>, transform_indices = @transform_15, window_bounds = array<i64: 256, 64>}, {pipeline_mode = #tpu.pipeline_mode<synchronous>, transform_indices = @transform_16, window_bounds = array<i64: 1, 64>}, {pipeline_mode = #tpu.pipeline_mode<synchronous>, transform_indices = @transform_17, window_bounds = array<i64: 1, 64>}, {pipeline_mode = #tpu.pipeline_mode<synchronous>, transform_indices = @transform_18, window_bounds = array<i64: 1, 64>}, {pipeline_mode = #tpu.pipeline_mode<synchronous>, transform_indices = @transform_19, window_bounds = array<i64: 1, 64>}, {pipeline_mode = #tpu.pipeline_mode<synchronous>, transform_indices = @transform_20, window_bounds = array<i64: 1, 64>}, {pipeline_mode = #tpu.pipeline_mode<synchronous>, transform_indices = @transform_21, window_bounds = array<i64: 8, 64>}]} {
    %c0 = arith.constant 0 : index
    %c0_0 = arith.constant 0 : index
    %0 = vector.load %arg1[%c0, %c0_0] : memref<8x64xf32, #tpu.memory_space<vmem>>, vector<8x64xf32>
    %1 = arith.truncf %0 : vector<8x64xf32> to vector<8x64xbf16>
    %c0_1 = arith.constant 0 : index
    %c0_2 = arith.constant 0 : index
    %2 = vector.load %arg4[%c0_1, %c0_2] : memref<64x64xbf16, #tpu.memory_space<vmem>>, vector<64x64xbf16>
    %cst = arith.constant dense<0.000000e+00> : vector<8x64xf32>
    %3 = tpu.matmul %1, %2, %cst {dimension_numbers = #tpu.dot_dimension_numbers<[1], [0], [0], [1], [0, 0, 1, 1], [], []>} : vector<8x64xbf16>, vector<64x64xbf16>, vector<8x64xf32> -> vector<8x64xf32>
    %c0_3 = arith.constant 0 : index
    %c0_4 = arith.constant 0 : index
    %4 = vector.load %arg5[%c0_3, %c0_4] : memref<1x64xf32, #tpu.memory_space<vmem>>, vector<1x64xf32>
    %5 = vector.broadcast %4 : vector<1x64xf32> to vector<8x64xf32>
    %6 = arith.addf %3, %5 : vector<8x64xf32>
    %c0_5 = arith.constant 0 : index
    %c0_6 = arith.constant 0 : index
    %7 = vector.load %arg6[%c0_5, %c0_6] : memref<64x64xbf16, #tpu.memory_space<vmem>>, vector<64x64xbf16>
    %c0_7 = arith.constant 0 : index
    %c0_8 = arith.constant 0 : index
    %8 = vector.load %arg2[%c0_7, %c0_8] : memref<64x16xbf16, #tpu.memory_space<vmem>>, vector<64x16xbf16>
    %cst_9 = arith.constant dense<0.000000e+00> : vector<64x16xf32>
    %9 = tpu.matmul %7, %8, %cst_9 {dimension_numbers = #tpu.dot_dimension_numbers<[1], [0], [0], [1], [0, 0, 1, 1], [], []>} : vector<64x64xbf16>, vector<64x16xbf16>, vector<64x16xf32> -> vector<64x16xf32>
    %c0_10 = arith.constant 0 : index
    %c0_11 = arith.constant 0 : index
    %10 = vector.load %arg7[%c0_10, %c0_11] : memref<64x16xf32, #tpu.memory_space<vmem>>, vector<64x16xf32>
    %11 = arith.addf %9, %10 : vector<64x16xf32>
    %12 = arith.truncf %11 : vector<64x16xf32> to vector<64x16xbf16>
    %13 = tpu.concatenate %12, %12, %12, %12, %12, %12, %12, %12 in 1 : vector<64x16xbf16>, vector<64x16xbf16>, vector<64x16xbf16>, vector<64x16xbf16>, vector<64x16xbf16>, vector<64x16xbf16>, vector<64x16xbf16>, vector<64x16xbf16> -> vector<64x128xbf16>
    %c0_12 = arith.constant 0 : index
    %c0_13 = arith.constant 0 : index
    %14 = vector.load %arg10[%c0_12, %c0_13] : memref<64x128xbf16, #tpu.memory_space<vmem>>, vector<64x128xbf16>
    %15 = arith.mulf %13, %14 : vector<64x128xbf16>
    %c0_14 = arith.constant 0 : index
    %c0_15 = arith.constant 0 : index
    %16 = vector.load %arg3[%c0_14, %c0_15] : memref<32x32xbf16, #tpu.memory_space<vmem>>, vector<32x32xbf16>
    %c0_16 = arith.constant 0 : index
    %c0_17 = arith.constant 0 : index
    %17 = vector.load %arg8[%c0_16, %c0_17] : memref<32x32xbf16, #tpu.memory_space<vmem>>, vector<32x32xbf16>
    %cst_18 = arith.constant dense<0.000000e+00> : vector<32x32xf32>
    %18 = tpu.matmul %16, %17, %cst_18 {dimension_numbers = #tpu.dot_dimension_numbers<[1], [0], [0], [1], [0, 0, 1, 1], [], []>} : vector<32x32xbf16>, vector<32x32xbf16>, vector<32x32xf32> -> vector<32x32xf32>
    %c0_19 = arith.constant 0 : index
    %c0_20 = arith.constant 0 : index
    %19 = vector.load %arg9[%c0_19, %c0_20] : memref<1x32xf32, #tpu.memory_space<vmem>>, vector<1x32xf32>
    %20 = vector.broadcast %19 : vector<1x32xf32> to vector<32x32xf32>
    %21 = arith.addf %18, %20 : vector<32x32xf32>
    %22 = arith.truncf %21 : vector<32x32xf32> to vector<32x32xbf16>
    %23 = tpu.concatenate %22, %22, %22, %22 in 0 : vector<32x32xbf16>, vector<32x32xbf16>, vector<32x32xbf16>, vector<32x32xbf16> -> vector<128x32xbf16>
    %24 = tpu.concatenate %23, %23 in 1 : vector<128x32xbf16>, vector<128x32xbf16> -> vector<128x64xbf16>
    %c0_21 = arith.constant 0 : index
    %c0_22 = arith.constant 0 : index
    %25 = vector.load %arg11[%c0_21, %c0_22] : memref<128x64xbf16, #tpu.memory_space<vmem>>, vector<128x64xbf16>
    %26 = arith.mulf %24, %25 : vector<128x64xbf16>
    %27 = arith.truncf %6 : vector<8x64xf32> to vector<8x64xbf16>
    %cst_23 = arith.constant dense<0.000000e+00> : vector<8x128xf32>
    %28 = tpu.matmul %27, %15, %cst_23 {dimension_numbers = #tpu.dot_dimension_numbers<[1], [0], [0], [1], [0, 0, 1, 1], [], []>} : vector<8x64xbf16>, vector<64x128xbf16>, vector<8x128xf32> -> vector<8x128xf32>
    %cst_24 = arith.constant dense<0xFF800000> : vector<8xf32>
    %29 = vector.multi_reduction <maximumf>, %28, %cst_24 [1] : vector<8x128xf32> to vector<8xf32>
    %30 = vector.shape_cast %29 : vector<8xf32> to vector<8x1xf32>
    %31 = vector.broadcast %30 : vector<8x1xf32> to vector<8x128xf32>
    %32 = arith.subf %28, %31 : vector<8x128xf32>
    %33 = math.exp %32 : vector<8x128xf32>
    %34 = arith.truncf %33 : vector<8x128xf32> to vector<8x128xbf16>
    %cst_25 = arith.constant dense<0.000000e+00> : vector<8x64xf32>
    %35 = tpu.matmul %34, %26, %cst_25 {dimension_numbers = #tpu.dot_dimension_numbers<[1], [0], [0], [1], [0, 0, 1, 1], [], []>} : vector<8x128xbf16>, vector<128x64xbf16>, vector<8x64xf32> -> vector<8x64xf32>
    %c0_26 = arith.constant 0 : index
    %c0_27 = arith.constant 0 : index
    %36 = vector.load %arg11[%c0_26, %c0_27] : memref<128x64xbf16, #tpu.memory_space<vmem>>, vector<128x64xbf16>
    %cst_28 = arith.constant dense<0.000000e+00> : vector<8x64xf32>
    %37 = tpu.matmul %34, %36, %cst_28 {dimension_numbers = #tpu.dot_dimension_numbers<[1], [0], [0], [1], [0, 0, 1, 1], [], []>} : vector<8x128xbf16>, vector<128x64xbf16>, vector<8x64xf32> -> vector<8x64xf32>
    %38 = tpu.reciprocal %37 {approx = true} : vector<8x64xf32> -> vector<8x64xf32>
    %39 = arith.mulf %35, %38 : vector<8x64xf32>
    %40 = arith.truncf %39 : vector<8x64xf32> to vector<8x64xbf16>
    %c0_29 = arith.constant 0 : index
    %c0_30 = arith.constant 0 : index
    %41 = vector.load %arg12[%c0_29, %c0_30] : memref<64x64xbf16, #tpu.memory_space<vmem>>, vector<64x64xbf16>
    %cst_31 = arith.constant dense<0.000000e+00> : vector<8x64xf32>
    %42 = tpu.matmul %40, %41, %cst_31 {dimension_numbers = #tpu.dot_dimension_numbers<[1], [0], [0], [1], [0, 0, 1, 1], [], []>} : vector<8x64xbf16>, vector<64x64xbf16>, vector<8x64xf32> -> vector<8x64xf32>
    %c0_32 = arith.constant 0 : index
    %c0_33 = arith.constant 0 : index
    %43 = vector.load %arg13[%c0_32, %c0_33] : memref<1x64xf32, #tpu.memory_space<vmem>>, vector<1x64xf32>
    %44 = vector.broadcast %43 : vector<1x64xf32> to vector<8x64xf32>
    %45 = arith.addf %42, %44 : vector<8x64xf32>
    %46 = arith.addf %0, %45 : vector<8x64xf32>
    %c0_34 = arith.constant 0 : index
    %c0_35 = arith.constant 0 : index
    %47 = vector.load %arg18[%c0_34, %c0_35] : memref<1x64xf32, #tpu.memory_space<vmem>>, vector<1x64xf32>
    %c0_36 = arith.constant 0 : index
    %c0_37 = arith.constant 0 : index
    %48 = vector.load %arg19[%c0_36, %c0_37] : memref<1x64xf32, #tpu.memory_space<vmem>>, vector<1x64xf32>
    %49 = vector.extract_strided_slice %46 {offsets = [0, 0], sizes = [8, 32], strides = [1, 1]} : vector<8x64xf32> to vector<8x32xf32>
    %cst_38 = arith.constant dense<0.000000e+00> : vector<8xf32>
    %50 = vector.multi_reduction <add>, %49, %cst_38 [1] : vector<8x32xf32> to vector<8xf32>
    %51 = vector.shape_cast %50 : vector<8xf32> to vector<8x1xf32>
    %cst_39 = arith.constant 3.200000e+01 : f32
    %52 = vector.broadcast %cst_39 : f32 to vector<8x1xf32>
    %53 = arith.divf %51, %52 : vector<8x1xf32>
    %54 = vector.broadcast %53 : vector<8x1xf32> to vector<8x32xf32>
    %55 = arith.subf %49, %54 : vector<8x32xf32>
    %56 = arith.mulf %55, %55 : vector<8x32xf32>
    %cst_40 = arith.constant dense<0.000000e+00> : vector<8xf32>
    %57 = vector.multi_reduction <add>, %56, %cst_40 [1] : vector<8x32xf32> to vector<8xf32>
    %58 = vector.shape_cast %57 : vector<8xf32> to vector<8x1xf32>
    %cst_41 = arith.constant 3.200000e+01 : f32
    %59 = vector.broadcast %cst_41 : f32 to vector<8x1xf32>
    %60 = arith.divf %58, %59 : vector<8x1xf32>
    %cst_42 = arith.constant 9.99999974E-6 : f32
    %61 = vector.broadcast %cst_42 : f32 to vector<8x1xf32>
    %62 = arith.addf %60, %61 : vector<8x1xf32>
    %63 = math.rsqrt %62 : vector<8x1xf32>
    %64 = vector.broadcast %63 : vector<8x1xf32> to vector<8x32xf32>
    %65 = arith.mulf %55, %64 : vector<8x32xf32>
    %66 = vector.extract_strided_slice %46 {offsets = [0, 32], sizes = [8, 32], strides = [1, 1]} : vector<8x64xf32> to vector<8x32xf32>
    %cst_43 = arith.constant dense<0.000000e+00> : vector<8xf32>
    %67 = vector.multi_reduction <add>, %66, %cst_43 [1] : vector<8x32xf32> to vector<8xf32>
    %68 = vector.shape_cast %67 : vector<8xf32> to vector<8x1xf32>
    %cst_44 = arith.constant 3.200000e+01 : f32
    %69 = vector.broadcast %cst_44 : f32 to vector<8x1xf32>
    %70 = arith.divf %68, %69 : vector<8x1xf32>
    %71 = vector.broadcast %70 : vector<8x1xf32> to vector<8x32xf32>
    %72 = arith.subf %66, %71 : vector<8x32xf32>
    %73 = arith.mulf %72, %72 : vector<8x32xf32>
    %cst_45 = arith.constant dense<0.000000e+00> : vector<8xf32>
    %74 = vector.multi_reduction <add>, %73, %cst_45 [1] : vector<8x32xf32> to vector<8xf32>
    %75 = vector.shape_cast %74 : vector<8xf32> to vector<8x1xf32>
    %cst_46 = arith.constant 3.200000e+01 : f32
    %76 = vector.broadcast %cst_46 : f32 to vector<8x1xf32>
    %77 = arith.divf %75, %76 : vector<8x1xf32>
    %cst_47 = arith.constant 9.99999974E-6 : f32
    %78 = vector.broadcast %cst_47 : f32 to vector<8x1xf32>
    %79 = arith.addf %77, %78 : vector<8x1xf32>
    %80 = math.rsqrt %79 : vector<8x1xf32>
    %81 = vector.broadcast %80 : vector<8x1xf32> to vector<8x32xf32>
    %82 = arith.mulf %72, %81 : vector<8x32xf32>
    %83 = tpu.concatenate %65, %82 in 1 : vector<8x32xf32>, vector<8x32xf32> -> vector<8x64xf32>
    %84 = vector.broadcast %47 : vector<1x64xf32> to vector<8x64xf32>
    %85 = arith.mulf %83, %84 : vector<8x64xf32>
    %86 = vector.broadcast %48 : vector<1x64xf32> to vector<8x64xf32>
    %87 = arith.addf %85, %86 : vector<8x64xf32>
    %88 = arith.truncf %87 : vector<8x64xf32> to vector<8x64xbf16>
    %c0_48 = arith.constant 0 : index
    %c0_49 = arith.constant 0 : index
    %89 = vector.load %arg14[%c0_48, %c0_49] : memref<64x256xbf16, #tpu.memory_space<vmem>>, vector<64x256xbf16>
    %cst_50 = arith.constant dense<0.000000e+00> : vector<8x256xf32>
    %90 = tpu.matmul %88, %89, %cst_50 {dimension_numbers = #tpu.dot_dimension_numbers<[1], [0], [0], [1], [0, 0, 1, 1], [], []>} : vector<8x64xbf16>, vector<64x256xbf16>, vector<8x256xf32> -> vector<8x256xf32>
    %c0_51 = arith.constant 0 : index
    %c0_52 = arith.constant 0 : index
    %91 = vector.load %arg15[%c0_51, %c0_52] : memref<1x256xf32, #tpu.memory_space<vmem>>, vector<1x256xf32>
    %92 = vector.broadcast %91 : vector<1x256xf32> to vector<8x256xf32>
    %93 = arith.addf %90, %92 : vector<8x256xf32>
    %cst_53 = arith.constant 5.000000e-01 : f32
    %94 = vector.broadcast %cst_53 : f32 to vector<8x256xf32>
    %95 = arith.mulf %94, %93 : vector<8x256xf32>
    %cst_54 = arith.constant 0.707106769 : f32
    %96 = vector.broadcast %cst_54 : f32 to vector<8x256xf32>
    %97 = arith.mulf %93, %96 : vector<8x256xf32>
    %cst_55 = arith.constant 0.000000e+00 : f32
    %98 = vector.broadcast %cst_55 : f32 to vector<8x256xf32>
    %99 = arith.cmpf oge, %97, %98 : vector<8x256xf32>
    %cst_56 = arith.constant 1.000000e+00 : f32
    %cst_57 = arith.constant -1.000000e+00 : f32
    %100 = vector.broadcast %cst_56 : f32 to vector<8x256xf32>
    %101 = vector.broadcast %cst_57 : f32 to vector<8x256xf32>
    %102 = arith.select %99, %100, %101 : vector<8x256xi1>, vector<8x256xf32>
    %103 = math.absf %97 : vector<8x256xf32>
    %cst_58 = arith.constant 0.327591091 : f32
    %104 = vector.broadcast %cst_58 : f32 to vector<8x256xf32>
    %105 = arith.mulf %104, %103 : vector<8x256xf32>
    %cst_59 = arith.constant 1.000000e+00 : f32
    %106 = vector.broadcast %cst_59 : f32 to vector<8x256xf32>
    %107 = arith.addf %106, %105 : vector<8x256xf32>
    %cst_60 = arith.constant 1.000000e+00 : f32
    %108 = vector.broadcast %cst_60 : f32 to vector<8x256xf32>
    %109 = arith.divf %108, %107 : vector<8x256xf32>
    %cst_61 = arith.constant 1.06140542 : f32
    %110 = vector.broadcast %cst_61 : f32 to vector<8x256xf32>
    %111 = arith.mulf %109, %110 : vector<8x256xf32>
    %cst_62 = arith.constant -1.45315206 : f32
    %112 = vector.broadcast %cst_62 : f32 to vector<8x256xf32>
    %113 = arith.addf %112, %111 : vector<8x256xf32>
    %114 = arith.mulf %109, %113 : vector<8x256xf32>
    %cst_63 = arith.constant 1.42141378 : f32
    %115 = vector.broadcast %cst_63 : f32 to vector<8x256xf32>
    %116 = arith.addf %115, %114 : vector<8x256xf32>
    %117 = arith.mulf %109, %116 : vector<8x256xf32>
    %cst_64 = arith.constant -0.284496725 : f32
    %118 = vector.broadcast %cst_64 : f32 to vector<8x256xf32>
    %119 = arith.addf %118, %117 : vector<8x256xf32>
    %120 = arith.mulf %109, %119 : vector<8x256xf32>
    %cst_65 = arith.constant 0.254829586 : f32
    %121 = vector.broadcast %cst_65 : f32 to vector<8x256xf32>
    %122 = arith.addf %121, %120 : vector<8x256xf32>
    %123 = arith.mulf %109, %122 : vector<8x256xf32>
    %cst_66 = arith.constant 0.000000e+00 : f32
    %124 = vector.broadcast %cst_66 : f32 to vector<8x256xf32>
    %125 = arith.subf %124, %103 : vector<8x256xf32>
    %126 = arith.mulf %125, %103 : vector<8x256xf32>
    %127 = math.exp %126 : vector<8x256xf32>
    %128 = arith.mulf %123, %127 : vector<8x256xf32>
    %cst_67 = arith.constant 1.000000e+00 : f32
    %129 = vector.broadcast %cst_67 : f32 to vector<8x256xf32>
    %130 = arith.subf %129, %128 : vector<8x256xf32>
    %131 = arith.mulf %102, %130 : vector<8x256xf32>
    %cst_68 = arith.constant 1.000000e+00 : f32
    %132 = vector.broadcast %cst_68 : f32 to vector<8x256xf32>
    %133 = arith.addf %132, %131 : vector<8x256xf32>
    %134 = arith.mulf %95, %133 : vector<8x256xf32>
    %135 = arith.truncf %134 : vector<8x256xf32> to vector<8x256xbf16>
    %c0_69 = arith.constant 0 : index
    %c0_70 = arith.constant 0 : index
    %136 = vector.load %arg16[%c0_69, %c0_70] : memref<256x64xbf16, #tpu.memory_space<vmem>>, vector<256x64xbf16>
    %cst_71 = arith.constant dense<0.000000e+00> : vector<8x64xf32>
    %137 = tpu.matmul %135, %136, %cst_71 {dimension_numbers = #tpu.dot_dimension_numbers<[1], [0], [0], [1], [0, 0, 1, 1], [], []>} : vector<8x256xbf16>, vector<256x64xbf16>, vector<8x64xf32> -> vector<8x64xf32>
    %c0_72 = arith.constant 0 : index
    %c0_73 = arith.constant 0 : index
    %138 = vector.load %arg17[%c0_72, %c0_73] : memref<1x64xf32, #tpu.memory_space<vmem>>, vector<1x64xf32>
    %139 = vector.broadcast %138 : vector<1x64xf32> to vector<8x64xf32>
    %140 = arith.addf %137, %139 : vector<8x64xf32>
    %141 = arith.addf %87, %140 : vector<8x64xf32>
    %c0_74 = arith.constant 0 : index
    %c0_75 = arith.constant 0 : index
    %142 = vector.load %arg20[%c0_74, %c0_75] : memref<1x64xf32, #tpu.memory_space<vmem>>, vector<1x64xf32>
    %c0_76 = arith.constant 0 : index
    %c0_77 = arith.constant 0 : index
    %143 = vector.load %arg21[%c0_76, %c0_77] : memref<1x64xf32, #tpu.memory_space<vmem>>, vector<1x64xf32>
    %144 = vector.extract_strided_slice %141 {offsets = [0, 0], sizes = [8, 32], strides = [1, 1]} : vector<8x64xf32> to vector<8x32xf32>
    %cst_78 = arith.constant dense<0.000000e+00> : vector<8xf32>
    %145 = vector.multi_reduction <add>, %144, %cst_78 [1] : vector<8x32xf32> to vector<8xf32>
    %146 = vector.shape_cast %145 : vector<8xf32> to vector<8x1xf32>
    %cst_79 = arith.constant 3.200000e+01 : f32
    %147 = vector.broadcast %cst_79 : f32 to vector<8x1xf32>
    %148 = arith.divf %146, %147 : vector<8x1xf32>
    %149 = vector.broadcast %148 : vector<8x1xf32> to vector<8x32xf32>
    %150 = arith.subf %144, %149 : vector<8x32xf32>
    %151 = arith.mulf %150, %150 : vector<8x32xf32>
    %cst_80 = arith.constant dense<0.000000e+00> : vector<8xf32>
    %152 = vector.multi_reduction <add>, %151, %cst_80 [1] : vector<8x32xf32> to vector<8xf32>
    %153 = vector.shape_cast %152 : vector<8xf32> to vector<8x1xf32>
    %cst_81 = arith.constant 3.200000e+01 : f32
    %154 = vector.broadcast %cst_81 : f32 to vector<8x1xf32>
    %155 = arith.divf %153, %154 : vector<8x1xf32>
    %cst_82 = arith.constant 9.99999974E-6 : f32
    %156 = vector.broadcast %cst_82 : f32 to vector<8x1xf32>
    %157 = arith.addf %155, %156 : vector<8x1xf32>
    %158 = math.rsqrt %157 : vector<8x1xf32>
    %159 = vector.broadcast %158 : vector<8x1xf32> to vector<8x32xf32>
    %160 = arith.mulf %150, %159 : vector<8x32xf32>
    %161 = vector.extract_strided_slice %141 {offsets = [0, 32], sizes = [8, 32], strides = [1, 1]} : vector<8x64xf32> to vector<8x32xf32>
    %cst_83 = arith.constant dense<0.000000e+00> : vector<8xf32>
    %162 = vector.multi_reduction <add>, %161, %cst_83 [1] : vector<8x32xf32> to vector<8xf32>
    %163 = vector.shape_cast %162 : vector<8xf32> to vector<8x1xf32>
    %cst_84 = arith.constant 3.200000e+01 : f32
    %164 = vector.broadcast %cst_84 : f32 to vector<8x1xf32>
    %165 = arith.divf %163, %164 : vector<8x1xf32>
    %166 = vector.broadcast %165 : vector<8x1xf32> to vector<8x32xf32>
    %167 = arith.subf %161, %166 : vector<8x32xf32>
    %168 = arith.mulf %167, %167 : vector<8x32xf32>
    %cst_85 = arith.constant dense<0.000000e+00> : vector<8xf32>
    %169 = vector.multi_reduction <add>, %168, %cst_85 [1] : vector<8x32xf32> to vector<8xf32>
    %170 = vector.shape_cast %169 : vector<8xf32> to vector<8x1xf32>
    %cst_86 = arith.constant 3.200000e+01 : f32
    %171 = vector.broadcast %cst_86 : f32 to vector<8x1xf32>
    %172 = arith.divf %170, %171 : vector<8x1xf32>
    %cst_87 = arith.constant 9.99999974E-6 : f32
    %173 = vector.broadcast %cst_87 : f32 to vector<8x1xf32>
    %174 = arith.addf %172, %173 : vector<8x1xf32>
    %175 = math.rsqrt %174 : vector<8x1xf32>
    %176 = vector.broadcast %175 : vector<8x1xf32> to vector<8x32xf32>
    %177 = arith.mulf %167, %176 : vector<8x32xf32>
    %178 = tpu.concatenate %160, %177 in 1 : vector<8x32xf32>, vector<8x32xf32> -> vector<8x64xf32>
    %179 = vector.broadcast %142 : vector<1x64xf32> to vector<8x64xf32>
    %180 = arith.mulf %178, %179 : vector<8x64xf32>
    %181 = vector.broadcast %143 : vector<1x64xf32> to vector<8x64xf32>
    %182 = arith.addf %180, %181 : vector<8x64xf32>
    %c0_88 = arith.constant 0 : index
    %c0_89 = arith.constant 0 : index
    %183 = vector.load %arg22[%c0_88, %c0_89] : memref<8x64xf32, #tpu.memory_space<vmem>>, vector<8x64xf32>
    tpu.vector_store %arg22[%c0_88, %c0_89], %182 {strides = array<i32>} : memref<8x64xf32, #tpu.memory_space<vmem>>, vector<8x64xf32>,
    return
  }
  func.func @transform_0(%arg0: i32) -> (i32, i32) {
    %c0_i32 = arith.constant 0 : i32
    %c0_i32_0 = arith.constant 0 : i32
    %c0_i32_1 = arith.constant 0 : i32
    return %c0_i32, %c0_i32_0 : i32, i32
  }
  func.func @transform_1(%arg0: i32) -> (i32, i32) {
    %c0_i32 = arith.constant 0 : i32
    %c0_i32_0 = arith.constant 0 : i32
    %c0_i32_1 = arith.constant 0 : i32
    return %c0_i32, %c0_i32_0 : i32, i32
  }
  func.func @transform_2(%arg0: i32) -> (i32, i32) {
    %c0_i32 = arith.constant 0 : i32
    %c0_i32_0 = arith.constant 0 : i32
    %c0_i32_1 = arith.constant 0 : i32
    return %c0_i32, %c0_i32_0 : i32, i32
  }
  func.func @transform_3(%arg0: i32) -> (i32, i32) {
    %c0_i32 = arith.constant 0 : i32
    %c0_i32_0 = arith.constant 0 : i32
    %c0_i32_1 = arith.constant 0 : i32
    return %c0_i32, %c0_i32_0 : i32, i32
  }
  func.func @transform_4(%arg0: i32) -> (i32, i32) {
    %c0_i32 = arith.constant 0 : i32
    %c0_i32_0 = arith.constant 0 : i32
    %c0_i32_1 = arith.constant 0 : i32
    return %c0_i32, %c0_i32_0 : i32, i32
  }
  func.func @transform_5(%arg0: i32) -> (i32, i32) {
    %c0_i32 = arith.constant 0 : i32
    %c0_i32_0 = arith.constant 0 : i32
    %c0_i32_1 = arith.constant 0 : i32
    return %c0_i32, %c0_i32_0 : i32, i32
  }
  func.func @transform_6(%arg0: i32) -> (i32, i32) {
    %c0_i32 = arith.constant 0 : i32
    %c0_i32_0 = arith.constant 0 : i32
    %c0_i32_1 = arith.constant 0 : i32
    return %c0_i32, %c0_i32_0 : i32, i32
  }
  func.func @transform_7(%arg0: i32) -> (i32, i32) {
    %c0_i32 = arith.constant 0 : i32
    %c0_i32_0 = arith.constant 0 : i32
    %c0_i32_1 = arith.constant 0 : i32
    return %c0_i32, %c0_i32_0 : i32, i32
  }
  func.func @transform_8(%arg0: i32) -> (i32, i32) {
    %c0_i32 = arith.constant 0 : i32
    %c0_i32_0 = arith.constant 0 : i32
    %c0_i32_1 = arith.constant 0 : i32
    return %c0_i32, %c0_i32_0 : i32, i32
  }
  func.func @transform_9(%arg0: i32) -> (i32, i32) {
    %c0_i32 = arith.constant 0 : i32
    %c0_i32_0 = arith.constant 0 : i32
    %c0_i32_1 = arith.constant 0 : i32
    return %c0_i32, %c0_i32_0 : i32, i32
  }
  func.func @transform_10(%arg0: i32) -> (i32, i32) {
    %c0_i32 = arith.constant 0 : i32
    %c0_i32_0 = arith.constant 0 : i32
    %c0_i32_1 = arith.constant 0 : i32
    return %c0_i32, %c0_i32_0 : i32, i32
  }
  func.func @transform_11(%arg0: i32) -> (i32, i32) {
    %c0_i32 = arith.constant 0 : i32
    %c0_i32_0 = arith.constant 0 : i32
    %c0_i32_1 = arith.constant 0 : i32
    return %c0_i32, %c0_i32_0 : i32, i32
  }
  func.func @transform_12(%arg0: i32) -> (i32, i32) {
    %c0_i32 = arith.constant 0 : i32
    %c0_i32_0 = arith.constant 0 : i32
    %c0_i32_1 = arith.constant 0 : i32
    return %c0_i32, %c0_i32_0 : i32, i32
  }
  func.func @transform_13(%arg0: i32) -> (i32, i32) {
    %c0_i32 = arith.constant 0 : i32
    %c0_i32_0 = arith.constant 0 : i32
    %c0_i32_1 = arith.constant 0 : i32
    return %c0_i32, %c0_i32_0 : i32, i32
  }
  func.func @transform_14(%arg0: i32) -> (i32, i32) {
    %c0_i32 = arith.constant 0 : i32
    %c0_i32_0 = arith.constant 0 : i32
    %c0_i32_1 = arith.constant 0 : i32
    return %c0_i32, %c0_i32_0 : i32, i32
  }
  func.func @transform_15(%arg0: i32) -> (i32, i32) {
    %c0_i32 = arith.constant 0 : i32
    %c0_i32_0 = arith.constant 0 : i32
    %c0_i32_1 = arith.constant 0 : i32
    return %c0_i32, %c0_i32_0 : i32, i32
  }
  func.func @transform_16(%arg0: i32) -> (i32, i32) {
    %c0_i32 = arith.constant 0 : i32
    %c0_i32_0 = arith.constant 0 : i32
    %c0_i32_1 = arith.constant 0 : i32
    return %c0_i32, %c0_i32_0 : i32, i32
  }
  func.func @transform_17(%arg0: i32) -> (i32, i32) {
    %c0_i32 = arith.constant 0 : i32
    %c0_i32_0 = arith.constant 0 : i32
    %c0_i32_1 = arith.constant 0 : i32
    return %c0_i32, %c0_i32_0 : i32, i32
  }
  func.func @transform_18(%arg0: i32) -> (i32, i32) {
    %c0_i32 = arith.constant 0 : i32
    %c0_i32_0 = arith.constant 0 : i32
    %c0_i32_1 = arith.constant 0 : i32
    return %c0_i32, %c0_i32_0 : i32, i32
  }
  func.func @transform_19(%arg0: i32) -> (i32, i32) {
    %c0_i32 = arith.constant 0 : i32
    %c0_i32_0 = arith.constant 0 : i32
    %c0_i32_1 = arith.constant 0 : i32
    return %c0_i32, %c0_i32_0 : i32, i32
  }
  func.func @transform_20(%arg0: i32) -> (i32, i32) {
    %c0_i32 = arith.constant 0 : i32
    %c0_i32_0 = arith.constant 0 : i32
    %c0_i32_1 = arith.constant 0 : i32
    return %c0_i32, %c0_i32_0 : i32, i32
  }
  func.func @transform_21(%arg0: i32) -> (i32, i32) {
    %c0_i32 = arith.constant 0 : i32
    %c0_i32_0 = arith.constant 0 : i32
    %c0_i32_1 = arith.constant 0 : i32
    return %c0_i32, %c0_i32_0 : i32, i32
  }
}

</mosaic_0001>

<llo_original>
// kernel: tpu_custom_call.1
$region0: #{tpu_custom_call.1}
  #allocation0 [shape = 'u32[]', space=smem, size = 0x4, offset = 0x4, fixed_abs, tag = 'smem constant byte address 0x4 - core index']
  #allocation1 [shape = 'u32[144,128]{1,0:T(1,128)}', space=vmem, size = 0x12000, scoped, tag = 'internal scratch']
  %s0 = inlined_call_operand.vmem [shape: f32[8,64], index: 0, kind: input, shape index: {}]
  %s1 = inlined_call_operand.vmem [shape: bf16[64,16], index: 1, kind: input, shape index: {}]
  %s2 = inlined_call_operand.vmem [shape: bf16[32,32], index: 2, kind: input, shape index: {}]
  %s3 = inlined_call_operand.vmem [shape: bf16[64,64], index: 3, kind: input, shape index: {}]
  %s4 = inlined_call_operand.vmem [shape: f32[1,64], index: 4, kind: input, shape index: {}]
  %s5 = inlined_call_operand.vmem [shape: bf16[64,64], index: 5, kind: input, shape index: {}]
  %s6 = inlined_call_operand.vmem [shape: f32[64,16], index: 6, kind: input, shape index: {}]
  %s7 = inlined_call_operand.vmem [shape: bf16[32,32], index: 7, kind: input, shape index: {}]
  %s8 = inlined_call_operand.vmem [shape: f32[1,32], index: 8, kind: input, shape index: {}]
  %s9 = inlined_call_operand.vmem [shape: bf16[64,128], index: 9, kind: input, shape index: {}]
  %s10 = inlined_call_operand.vmem [shape: bf16[128,64], index: 10, kind: input, shape index: {}]
  %s11 = inlined_call_operand.vmem [shape: bf16[64,64], index: 11, kind: input, shape index: {}]
  %s12 = inlined_call_operand.vmem [shape: f32[1,64], index: 12, kind: input, shape index: {}]
  %s13 = inlined_call_operand.vmem [shape: bf16[64,256], index: 13, kind: input, shape index: {}]
  %s14 = inlined_call_operand.vmem [shape: f32[1,256], index: 14, kind: input, shape index: {}]
  %s15 = inlined_call_operand.vmem [shape: bf16[256,64], index: 15, kind: input, shape index: {}]
  %s16 = inlined_call_operand.vmem [shape: f32[1,64], index: 16, kind: input, shape index: {}]
  %s17 = inlined_call_operand.vmem [shape: f32[1,64], index: 17, kind: input, shape index: {}]
  %s18 = inlined_call_operand.vmem [shape: f32[1,64], index: 18, kind: input, shape index: {}]
  %s19 = inlined_call_operand.vmem [shape: f32[1,64], index: 19, kind: input, shape index: {}]
  %s20 = inlined_call_operand.vmem [shape: f32[1,64], index: 20, kind: input, shape index: {}]
  %s21 = inlined_call_operand.hbm [shape: f32[8,64], index: 21, kind: output, shape index: {}]
  %s22 = sld [smem:[#allocation0]]
  $region94: #{tpu_custom_call.1} parent=0
    _
  %s24 = ssub.s32 1, %s22
  %s25 = scalar_select 0, %s24, %s22
  $region1: #{tpu_custom_call.1} parent=0
    #allocation2 [shape = 'u8[4096]{0}', space=vmem, size = 0x1000, scoped, tag = 'output window, operand 0, single buffered']
    #allocation3 [shape = 's32[1]{0}', space=sflag, size = 0x4, scoped, tag = 'scoped memory for tpu_custom_call.1']
    %26 = vsyncpa [#allocation3], 0
    // Predicated region
    $region2: #{tpu_custom_call.1} parent=1 // pred_check
      _
    $region3: #{tpu_custom_call.1} parent=1 // pred_check_branch
      %28 = sbr.rel (0) target = $region5
    $region4: #{tpu_custom_call.1} parent=1 // pred_region
      _
    $region5: #{tpu_custom_call.1} parent=1 // pred_fallthru
      _
    // Predicated region
    $region6: #{tpu_custom_call.1} parent=1 // pred_check
      _
    $region7: #{tpu_custom_call.1} parent=1 // pred_check_branch
      %30 = sbr.rel (0) target = $region9
    $region8: #{tpu_custom_call.1} parent=1 // pred_region
      _
    $region9: #{tpu_custom_call.1} parent=1 // pred_fallthru
      _
    // Predicated region
    $region10: #{tpu_custom_call.1} parent=1 // pred_check
      _
    $region11: #{tpu_custom_call.1} parent=1 // pred_check_branch
      %32 = sbr.rel (0) target = $region13
    $region12: #{tpu_custom_call.1} parent=1 // pred_region
      _
    $region13: #{tpu_custom_call.1} parent=1 // pred_fallthru
      _
    // Predicated region
    $region14: #{tpu_custom_call.1} parent=1 // pred_check
      _
    $region15: #{tpu_custom_call.1} parent=1 // pred_check_branch
      %34 = sbr.rel (0) target = $region17
    $region16: #{tpu_custom_call.1} parent=1 // pred_region
      _
    $region17: #{tpu_custom_call.1} parent=1 // pred_fallthru
      _
    // Predicated region
    $region18: #{tpu_custom_call.1} parent=1 // pred_check
      _
    $region19: #{tpu_custom_call.1} parent=1 // pred_check_branch
      %36 = sbr.rel (0) target = $region21
    $region20: #{tpu_custom_call.1} parent=1 // pred_region
      _
    $region21: #{tpu_custom_call.1} parent=1 // pred_fallthru
      _
    // Predicated region
    $region22: #{tpu_custom_call.1} parent=1 // pred_check
      _
    $region23: #{tpu_custom_call.1} parent=1 // pred_check_branch
      %38 = sbr.rel (0) target = $region25
    $region24: #{tpu_custom_call.1} parent=1 // pred_region
      _
    $region25: #{tpu_custom_call.1} parent=1 // pred_fallthru
      _
    // Predicated region
    $region26: #{tpu_custom_call.1} parent=1 // pred_check
      _
    $region27: #{tpu_custom_call.1} parent=1 // pred_check_branch
      %40 = sbr.rel (0) target = $region29
    $region28: #{tpu_custom_call.1} parent=1 // pred_region
      _
    $region29: #{tpu_custom_call.1} parent=1 // pred_fallthru
      _
    // Predicated region
    $region30: #{tpu_custom_call.1} parent=1 // pred_check
      _
    $region31: #{tpu_custom_call.1} parent=1 // pred_check_branch
      %42 = sbr.rel (0) target = $region33
    $region32: #{tpu_custom_call.1} parent=1 // pred_region
      _
    $region33: #{tpu_custom_call.1} parent=1 // pred_fallthru
      _
    // Predicated region
    $region34: #{tpu_custom_call.1} parent=1 // pred_check
      _
    $region35: #{tpu_custom_call.1} parent=1 // pred_check_branch
      %44 = sbr.rel (0) target = $region37
    $region36: #{tpu_custom_call.1} parent=1 // pred_region
      _
    $region37: #{tpu_custom_call.1} parent=1 // pred_fallthru
      _
    // Predicated region
    $region38: #{tpu_custom_call.1} parent=1 // pred_check
      _
    $region39: #{tpu_custom_call.1} parent=1 // pred_check_branch
      %46 = sbr.rel (0) target = $region41
    $region40: #{tpu_custom_call.1} parent=1 // pred_region
      _
    $region41: #{tpu_custom_call.1} parent=1 // pred_fallthru
      _
    // Predicated region
    $region42: #{tpu_custom_call.1} parent=1 // pred_check
      _
    $region43: #{tpu_custom_call.1} parent=1 // pred_check_branch
      %48 = sbr.rel (0) target = $region45
    $region44: #{tpu_custom_call.1} parent=1 // pred_region
      _
    $region45: #{tpu_custom_call.1} parent=1 // pred_fallthru
      _
    // Predicated region
    $region46: #{tpu_custom_call.1} parent=1 // pred_check
      _
    $region47: #{tpu_custom_call.1} parent=1 // pred_check_branch
      %50 = sbr.rel (0) target = $region49
    $region48: #{tpu_custom_call.1} parent=1 // pred_region
      _
    $region49: #{tpu_custom_call.1} parent=1 // pred_fallthru
      _
    // Predicated region
    $region50: #{tpu_custom_call.1} parent=1 // pred_check
      _
    $region51: #{tpu_custom_call.1} parent=1 // pred_check_branch
      %52 = sbr.rel (0) target = $region53
    $region52: #{tpu_custom_call.1} parent=1 // pred_region
      _
    $region53: #{tpu_custom_call.1} parent=1 // pred_fallthru
      _
    // Predicated region
    $region54: #{tpu_custom_call.1} parent=1 // pred_check
      _
    $region55: #{tpu_custom_call.1} parent=1 // pred_check_branch
      %54 = sbr.rel (0) target = $region57
    $region56: #{tpu_custom_call.1} parent=1 // pred_region
      _
    $region57: #{tpu_custom_call.1} parent=1 // pred_fallthru
      _
    // Predicated region
    $region58: #{tpu_custom_call.1} parent=1 // pred_check
      _
    $region59: #{tpu_custom_call.1} parent=1 // pred_check_branch
      %56 = sbr.rel (0) target = $region61
    $region60: #{tpu_custom_call.1} parent=1 // pred_region
      _
    $region61: #{tpu_custom_call.1} parent=1 // pred_fallthru
      _
    // Predicated region
    $region62: #{tpu_custom_call.1} parent=1 // pred_check
      _
    $region63: #{tpu_custom_call.1} parent=1 // pred_check_branch
      %58 = sbr.rel (0) target = $region65
    $region64: #{tpu_custom_call.1} parent=1 // pred_region
      _
    $region65: #{tpu_custom_call.1} parent=1 // pred_fallthru
      _
    // Predicated region
    $region66: #{tpu_custom_call.1} parent=1 // pred_check
      _
    $region67: #{tpu_custom_call.1} parent=1 // pred_check_branch
      %60 = sbr.rel (0) target = $region69
    $region68: #{tpu_custom_call.1} parent=1 // pred_region
      _
    $region69: #{tpu_custom_call.1} parent=1 // pred_fallthru
      _
    // Predicated region
    $region70: #{tpu_custom_call.1} parent=1 // pred_check
      _
    $region71: #{tpu_custom_call.1} parent=1 // pred_check_branch
      %62 = sbr.rel (0) target = $region73
    $region72: #{tpu_custom_call.1} parent=1 // pred_region
      _
    $region73: #{tpu_custom_call.1} parent=1 // pred_fallthru
      _
    // Predicated region
    $region74: #{tpu_custom_call.1} parent=1 // pred_check
      _
    $region75: #{tpu_custom_call.1} parent=1 // pred_check_branch
      %64 = sbr.rel (0) target = $region77
    $region76: #{tpu_custom_call.1} parent=1 // pred_region
      _
    $region77: #{tpu_custom_call.1} parent=1 // pred_fallthru
      _
    // Predicated region
    $region78: #{tpu_custom_call.1} parent=1 // pred_check
      _
    $region79: #{tpu_custom_call.1} parent=1 // pred_check_branch
      %66 = sbr.rel (0) target = $region81
    $region80: #{tpu_custom_call.1} parent=1 // pred_region
      _
    $region81: #{tpu_custom_call.1} parent=1 // pred_fallthru
      _
    // Predicated region
    $region82: #{tpu_custom_call.1} parent=1 // pred_check
      _
    $region83: #{tpu_custom_call.1} parent=1 // pred_check_branch
      %68 = sbr.rel (0) target = $region85
    $region84: #{tpu_custom_call.1} parent=1 // pred_region
      _
    $region85: #{tpu_custom_call.1} parent=1 // pred_fallthru
      _
    %v70 = vld [vmem:[%s0] sm:$0xff]
    %v71 = vpack.c.bf16 %v70, %v70
    %v72 = vld [vmem:[%s3] sm:$0xf]
    %v73 = vld [vmem:[%s3 + $0x4] sm:$0xf]
    %v74 = vld [vmem:[%s3 + $0x8] sm:$0xf]
    %v75 = vld [vmem:[%s3 + $0xc] sm:$0xf]
    %v76 = vld [vmem:[%s3 + $0x10] sm:$0xf]
    %v77 = vld [vmem:[%s3 + $0x14] sm:$0xf]
    %v78 = vld [vmem:[%s3 + $0x18] sm:$0xf]
    %v79 = vld [vmem:[%s3 + $0x1c] sm:$0xf]
    %v80 = vld [vmem:[%s4] sm:$0x1]
    %v82 = vlaneseq
    %v83 = vshrl.u32 %v82, 7
    %v84 = vsub.s32 0, %v83
    %v85 = vrot.slane %v80, %v84
    %v95 = vunpack.c.l.b16 %v72
    %v96 = vunpack.c.l.b16 %v73
    %v97 = vunpack.c.l.b16 %v74
    %v98 = vunpack.c.l.b16 %v75
    %v99 = vunpack.c.l.b16 %v76
    %v100 = vunpack.c.l.b16 %v77
    %v101 = vunpack.c.l.b16 %v78
    %v102 = vunpack.c.l.b16 %v79
    %v103 = vpack.c.b16 %v96, %v95
    %v104 = vpack.c.b16 %v98, %v97
    %v105 = vpack.c.b16 %v100, %v99
    %v106 = vpack.c.b16 %v102, %v101
    %vm111 = vcmask 523264
    %v113 = vsel %vm111, %v71, 0
    %115 = vmatprep.subr.bf16.mxu0 0
    %116 = vmatpush1.bf16.msra.mxu0 0
    %117 = vmatprep.subr.bf16.mxu0 0
    %118 = vmatpush1.bf16.msra.mxu0 0
    %119 = vmatprep.subr.bf16.mxu0 0
    %120 = vmatpush1.bf16.msra.mxu0 0
    %121 = vmatprep.subr.bf16.mxu0 0
    %122 = vmatpush1.bf16.msra.mxu0 0
    %123 = vmatprep.subr.bf16.mxu0 0
    %124 = vmatpush1.bf16.msra.mxu0 %v106
    %125 = vmatprep.subr.bf16.mxu0 0
    %126 = vmatpush1.bf16.msra.mxu0 %v105
    %127 = vmatprep.subr.bf16.mxu0 0
    %128 = vmatpush1.bf16.msra.mxu0 %v104
    %129 = vmatprep.subr.bf16.mxu0 0
    %130 = vmatpush1.bf16.msra.mxu0 %v103
    %131 = vmatprep.subr.bf16.mxu0 0
    %132 = vmatpush2.bf16.msra.mxu0 0
    %133 = vmatprep.subr.bf16.mxu0 0
    %134 = vmatpush2.bf16.msra.mxu0 0
    %135 = vmatprep.subr.bf16.mxu0 0
    %136 = vmatpush2.bf16.msra.mxu0 0
    %137 = vmatprep.subr.bf16.mxu0 0
    %138 = vmatpush2.bf16.msra.mxu0 0
    %139 = vmatprep.subr.bf16.mxu0 0
    %140 = vmatpush2.bf16.msra.mxu0 0
    %141 = vmatprep.subr.bf16.mxu0 0
    %142 = vmatpush2.bf16.msra.mxu0 0
    %143 = vmatprep.subr.bf16.mxu0 0
    %144 = vmatpush2.bf16.msra.mxu0 0
    %145 = vmatprep.subr.bf16.mxu0 0
    %146 = vmatpush2.bf16.msra.mxu0 0
    %147 = vmatprep.mubr.bf16.mxu0 0
    %148 = vmatmul.mubr.bf16.gmra.mxu0 %v113
    %v149 = vpop.f32.mrf.mxu0
    %v150 = vadd.f32 %v85, %v149
    %v151 = vpop.f32.mrf.mxu0
    %v152 = vpop.f32.mrf.mxu0
    %v153 = vpop.f32.mrf.mxu0
    %154 = vdwg.mxu0
    %v155 = vld [vmem:[%s5] sm:$0xf]
    %v156 = vld [vmem:[%s5 + $0x4] sm:$0xf]
    %v157 = vld [vmem:[%s5 + $0x8] sm:$0xf]
    %v158 = vld [vmem:[%s5 + $0xc] sm:$0xf]
    %v159 = vld [vmem:[%s5 + $0x10] sm:$0xf]
    %v160 = vld [vmem:[%s5 + $0x14] sm:$0xf]
    %v161 = vld [vmem:[%s5 + $0x18] sm:$0xf]
    %v162 = vld [vmem:[%s5 + $0x1c] sm:$0xf]
    %v163 = vld [vmem:[%s1] sm:$0xf]
    %v164 = vld [vmem:[%s1 + $0x4] sm:$0xf]
    %v165 = vld [vmem:[%s1 + $0x8] sm:$0xf]
    %v166 = vld [vmem:[%s1 + $0xc] sm:$0xf]
    %v167 = vld [vmem:[%s1 + $0x10] sm:$0xf]
    %v168 = vld [vmem:[%s1 + $0x14] sm:$0xf]
    %v169 = vld [vmem:[%s1 + $0x18] sm:$0xf]
    %v170 = vld [vmem:[%s1 + $0x1c] sm:$0xf]
    %v171 = vld [vmem:[%s6] sm:$0xff]
    %v172 = vld [vmem:[%s6 + $0x8] sm:$0xff]
    %v173 = vld [vmem:[%s6 + $0x10] sm:$0xff]
    %v174 = vld [vmem:[%s6 + $0x18] sm:$0xff]
    %v175 = vld [vmem:[%s6 + $0x20] sm:$0xff]
    %v176 = vld [vmem:[%s6 + $0x28] sm:$0xff]
    %v177 = vld [vmem:[%s6 + $0x30] sm:$0xff]
    %v178 = vld [vmem:[%s6 + $0x38] sm:$0xff]
    %v187 = vunpack.c.l.b16 %v155
    %v188 = vunpack.c.l.b16 %v156
    %v189 = vunpack.c.l.b16 %v157
    %v190 = vunpack.c.l.b16 %v158
    %v191 = vunpack.c.l.b16 %v159
    %v192 = vunpack.c.l.b16 %v160
    %v193 = vunpack.c.l.b16 %v161
    %v194 = vunpack.c.l.b16 %v162
    %v195 = vpack.c.b16 %v188, %v187
    %v196 = vpack.c.b16 %v190, %v189
    %v197 = vpack.c.b16 %v192, %v191
    %v198 = vpack.c.b16 %v194, %v193
    %v207 = vunpack.c.l.b16 %v163
    %v208 = vunpack.c.l.b16 %v164
    %v209 = vunpack.c.l.b16 %v165
    %v210 = vunpack.c.l.b16 %v166
    %v211 = vunpack.c.l.b16 %v167
    %v212 = vunpack.c.l.b16 %v168
    %v213 = vunpack.c.l.b16 %v169
    %v214 = vunpack.c.l.b16 %v170
    %v215 = vpack.c.b16 %v208, %v207
    %v216 = vpack.c.b16 %v210, %v209
    %v217 = vpack.c.b16 %v212, %v211
    %v218 = vpack.c.b16 %v214, %v213
    %v224 = vsel %vm111, %v195, 0
    %v227 = vsel %vm111, %v196, 0
    %v230 = vsel %vm111, %v197, 0
    %v233 = vsel %vm111, %v198, 0
    %235 = vmatprep.subr.bf16.mxu0 0
    %236 = vmatpush1.bf16.msra.mxu0 0
    %237 = vmatprep.subr.bf16.mxu0 0
    %238 = vmatpush1.bf16.msra.mxu0 0
    %239 = vmatprep.subr.bf16.mxu0 0
    %240 = vmatpush1.bf16.msra.mxu0 0
    %241 = vmatprep.subr.bf16.mxu0 0
    %242 = vmatpush1.bf16.msra.mxu0 0
    %243 = vmatprep.subr.bf16.mxu0 0
    %244 = vmatpush1.bf16.msra.mxu0 %v218
    %245 = vmatprep.subr.bf16.mxu0 0
    %246 = vmatpush1.bf16.msra.mxu0 %v217
    %247 = vmatprep.subr.bf16.mxu0 0
    %248 = vmatpush1.bf16.msra.mxu0 %v216
    %249 = vmatprep.subr.bf16.mxu0 0
    %250 = vmatpush1.bf16.msra.mxu0 %v215
    %251 = vmatprep.subr.bf16.mxu0 0
    %252 = vmatpush2.bf16.msra.mxu0 0
    %253 = vmatprep.subr.bf16.mxu0 0
    %254 = vmatpush2.bf16.msra.mxu0 0
    %255 = vmatprep.subr.bf16.mxu0 0
    %256 = vmatpush2.bf16.msra.mxu0 0
    %257 = vmatprep.subr.bf16.mxu0 0
    %258 = vmatpush2.bf16.msra.mxu0 0
    %259 = vmatprep.subr.bf16.mxu0 0
    %260 = vmatpush2.bf16.msra.mxu0 0
    %261 = vmatprep.subr.bf16.mxu0 0
    %262 = vmatpush2.bf16.msra.mxu0 0
    %263 = vmatprep.subr.bf16.mxu0 0
    %264 = vmatpush2.bf16.msra.mxu0 0
    %265 = vmatprep.subr.bf16.mxu0 0
    %266 = vmatpush2.bf16.msra.mxu0 0
    %267 = vmatprep.mubr.bf16.mxu0 0
    %268 = vmatmul.mubr.bf16.gmra.mxu0 %v224
    %v269 = vpop.f32.mrf.mxu0
    %v270 = vadd.f32 %v171, %v269
    %v271 = vpop.f32.mrf.mxu0
    %v272 = vpop.f32.mrf.mxu0
    %v273 = vadd.f32 %v172, %v272
    %v274 = vpop.f32.mrf.mxu0
    %275 = vmatprep.mubr.bf16.mxu0 0
    %276 = vmatmul.mubr.bf16.gmra.mxu0 %v227
    %v277 = vpop.f32.mrf.mxu0
    %v278 = vadd.f32 %v173, %v277
    %v279 = vpop.f32.mrf.mxu0
    %v280 = vpop.f32.mrf.mxu0
    %v281 = vadd.f32 %v174, %v280
    %v282 = vpop.f32.mrf.mxu0
    %283 = vmatprep.mubr.bf16.mxu0 0
    %284 = vmatmul.mubr.bf16.gmra.mxu0 %v230
    %v285 = vpop.f32.mrf.mxu0
    %v286 = vadd.f32 %v175, %v285
    %v287 = vpop.f32.mrf.mxu0
    %v288 = vpop.f32.mrf.mxu0
    %v289 = vadd.f32 %v176, %v288
    %v290 = vpop.f32.mrf.mxu0
    %291 = vmatprep.mubr.bf16.mxu0 0
    %292 = vmatmul.mubr.bf16.gmra.mxu0 %v233
    %v293 = vpop.f32.mrf.mxu0
    %v294 = vadd.f32 %v177, %v293
    %v295 = vpop.f32.mrf.mxu0
    %v296 = vpop.f32.mrf.mxu0
    %v297 = vadd.f32 %v178, %v296
    %v298 = vpop.f32.mrf.mxu0
    %299 = vdwg.mxu0
    %v300 = vpack.c.bf16 %v273, %v270
    %v301 = vpack.c.bf16 %v281, %v278
    %v302 = vpack.c.bf16 %v289, %v286
    %v303 = vpack.c.bf16 %v297, %v294
    %308 = vrot.lane.b32.xlu0 %v300, 16
    %v309 = vpop.permute.xlu0 %308
    %310 = vrot.lane.b32.xlu0 %v301, 16
    %v311 = vpop.permute.xlu0 %310
    %312 = vrot.lane.b32.xlu0 %v302, 16
    %v313 = vpop.permute.xlu0 %312
    %314 = vrot.lane.b32.xlu0 %v303, 16
    %v315 = vpop.permute.xlu0 %314
    %316 = vrot.lane.b32.xlu0 %v300, 32
    %v317 = vpop.permute.xlu0 %316
    %318 = vrot.lane.b32.xlu0 %v301, 32
    %v319 = vpop.permute.xlu0 %318
    %320 = vrot.lane.b32.xlu0 %v302, 32
    %v321 = vpop.permute.xlu0 %320
    %322 = vrot.lane.b32.xlu0 %v303, 32
    %v323 = vpop.permute.xlu0 %322
    %324 = vrot.lane.b32.xlu0 %v300, 48
    %v325 = vpop.permute.xlu0 %324
    %326 = vrot.lane.b32.xlu0 %v301, 48
    %v327 = vpop.permute.xlu0 %326
    %328 = vrot.lane.b32.xlu0 %v302, 48
    %v329 = vpop.permute.xlu0 %328
    %330 = vrot.lane.b32.xlu0 %v303, 48
    %v331 = vpop.permute.xlu0 %330
    %332 = vrot.lane.b32.xlu0 %v300, 64
    %v333 = vpop.permute.xlu0 %332
    %334 = vrot.lane.b32.xlu0 %v301, 64
    %v335 = vpop.permute.xlu0 %334
    %336 = vrot.lane.b32.xlu0 %v302, 64
    %v337 = vpop.permute.xlu0 %336
    %338 = vrot.lane.b32.xlu0 %v303, 64
    %v339 = vpop.permute.xlu0 %338
    %340 = vrot.lane.b32.xlu0 %v300, 80
    %v341 = vpop.permute.xlu0 %340
    %342 = vrot.lane.b32.xlu0 %v301, 80
    %v343 = vpop.permute.xlu0 %342
    %344 = vrot.lane.b32.xlu0 %v302, 80
    %v345 = vpop.permute.xlu0 %344
    %346 = vrot.lane.b32.xlu0 %v303, 80
    %v347 = vpop.permute.xlu0 %346
    %348 = vrot.lane.b32.xlu0 %v300, 96
    %v349 = vpop.permute.xlu0 %348
    %350 = vrot.lane.b32.xlu0 %v301, 96
    %v351 = vpop.permute.xlu0 %350
    %352 = vrot.lane.b32.xlu0 %v302, 96
    %v353 = vpop.permute.xlu0 %352
    %354 = vrot.lane.b32.xlu0 %v303, 96
    %v355 = vpop.permute.xlu0 %354
    %356 = vrot.lane.b32.xlu0 %v300, 112
    %v357 = vpop.permute.xlu0 %356
    %358 = vrot.lane.b32.xlu0 %v301, 112
    %v359 = vpop.permute.xlu0 %358
    %360 = vrot.lane.b32.xlu0 %v302, 112
    %v361 = vpop.permute.xlu0 %360
    %362 = vrot.lane.b32.xlu0 %v303, 112
    %v363 = vpop.permute.xlu0 %362
    %vm364 = vcmask 130048
    %v367 = vsel %vm364, %v300, %v309
    %v370 = vsel %vm364, %v301, %v311
    %v373 = vsel %vm364, %v302, %v313
    %v376 = vsel %vm364, %v303, %v315
    %vm377 = vcmask 261120
    %v379 = vsel %vm377, %v367, %v317
    %v381 = vsel %vm377, %v370, %v319
    %v383 = vsel %vm377, %v373, %v321
    %v385 = vsel %vm377, %v376, %v323
    %vm386 = vcmask 392192
    %v388 = vsel %vm386, %v379, %v325
    %v390 = vsel %vm386, %v381, %v327
    %v392 = vsel %vm386, %v383, %v329
    %v394 = vsel %vm386, %v385, %v331
    %v396 = vsel %vm111, %v388, %v333
    %v398 = vsel %vm111, %v390, %v335
    %v400 = vsel %vm111, %v392, %v337
    %v402 = vsel %vm111, %v394, %v339
    %vm403 = vcmask 654336
    %v405 = vsel %vm403, %v396, %v341
    %v407 = vsel %vm403, %v398, %v343
    %v409 = vsel %vm403, %v400, %v345
    %v411 = vsel %vm403, %v402, %v347
    %vm412 = vcmask 785408
    %v414 = vsel %vm412, %v405, %v349
    %v416 = vsel %vm412, %v407, %v351
    %v418 = vsel %vm412, %v409, %v353
    %v420 = vsel %vm412, %v411, %v355
    %vm421 = vcmask 916480
    %v423 = vsel %vm421, %v414, %v357
    %v426 = vsel %vm421, %v416, %v359
    %v429 = vsel %vm421, %v418, %v361
    %v432 = vsel %vm421, %v420, %v363
    %v434 = vld [vmem:[%s9] sm:$0xf]
    %v435 = vld [vmem:[%s9 + $0x4] sm:$0xf]
    %v436 = vld [vmem:[%s9 + $0x8] sm:$0xf]
    %v437 = vld [vmem:[%s9 + $0xc] sm:$0xf]
    %v438 = vld [vmem:[%s9 + $0x10] sm:$0xf]
    %v439 = vld [vmem:[%s9 + $0x14] sm:$0xf]
    %v440 = vld [vmem:[%s9 + $0x18] sm:$0xf]
    %v441 = vld [vmem:[%s9 + $0x1c] sm:$0xf]
    %v450 = vunpack.c.l.b16 %v434
    %v451 = vunpack.c.l.b16 %v435
    %v452 = vunpack.c.l.b16 %v436
    %v453 = vunpack.c.l.b16 %v437
    %v454 = vunpack.c.l.b16 %v438
    %v455 = vunpack.c.l.b16 %v439
    %v456 = vunpack.c.l.b16 %v440
    %v457 = vunpack.c.l.b16 %v441
    %v458 = vpack.c.b16 %v451, %v450
    %v459 = vpack.c.b16 %v453, %v452
    %v460 = vpack.c.b16 %v455, %v454
    %v461 = vpack.c.b16 %v457, %v456
    %v466 = vmul.bf16 %v423, %v458
    %v467 = vmul.bf16 %v426, %v459
    %v468 = vmul.bf16 %v429, %v460
    %v469 = vmul.bf16 %v432, %v461
    %v470 = vld [vmem:[%s2] sm:$0xf]
    %v471 = vld [vmem:[%s2 + $0x4] sm:$0xf]
    %v472 = vld [vmem:[%s2 + $0x8] sm:$0xf]
    %v473 = vld [vmem:[%s2 + $0xc] sm:$0xf]
    %v474 = vld [vmem:[%s7] sm:$0xf]
    %v475 = vld [vmem:[%s7 + $0x4] sm:$0xf]
    %v476 = vld [vmem:[%s7 + $0x8] sm:$0xf]
    %v477 = vld [vmem:[%s7 + $0xc] sm:$0xf]
    %v478 = vld [vmem:[%s8] sm:$0x1]
    %v480 = vlaneseq
    %v481 = vshrl.u32 %v480, 7
    %v482 = vsub.s32 0, %v481
    %v483 = vrot.slane %v478, %v482
    %v489 = vunpack.c.l.b16 %v470
    %v490 = vunpack.c.l.b16 %v471
    %v491 = vunpack.c.l.b16 %v472
    %v492 = vunpack.c.l.b16 %v473
    %v493 = vpack.c.b16 %v490, %v489
    %v494 = vpack.c.b16 %v492, %v491
    %v499 = vunpack.c.l.b16 %v474
    %v500 = vunpack.c.l.b16 %v475
    %v501 = vunpack.c.l.b16 %v476
    %v502 = vunpack.c.l.b16 %v477
    %v503 = vpack.c.b16 %v500, %v499
    %v504 = vpack.c.b16 %v502, %v501
    %v508 = vsel %vm377, %v493, 0
    %v511 = vsel %vm377, %v494, 0
    %513 = vmatprep.subr.bf16.mxu0 0
    %514 = vmatpush1.bf16.msra.mxu0 0
    %515 = vmatprep.subr.bf16.mxu0 0
    %516 = vmatpush1.bf16.msra.mxu0 0
    %517 = vmatprep.subr.bf16.mxu0 0
    %518 = vmatpush1.bf16.msra.mxu0 0
    %519 = vmatprep.subr.bf16.mxu0 0
    %520 = vmatpush1.bf16.msra.mxu0 0
    %521 = vmatprep.subr.bf16.mxu0 0
    %522 = vmatpush1.bf16.msra.mxu0 0
    %523 = vmatprep.subr.bf16.mxu0 0
    %524 = vmatpush1.bf16.msra.mxu0 0
    %525 = vmatprep.subr.bf16.mxu0 0
    %526 = vmatpush1.bf16.msra.mxu0 %v504
    %527 = vmatprep.subr.bf16.mxu0 0
    %528 = vmatpush1.bf16.msra.mxu0 %v503
    %529 = vmatprep.subr.bf16.mxu0 0
    %530 = vmatpush2.bf16.msra.mxu0 0
    %531 = vmatprep.subr.bf16.mxu0 0
    %532 = vmatpush2.bf16.msra.mxu0 0
    %533 = vmatprep.subr.bf16.mxu0 0
    %534 = vmatpush2.bf16.msra.mxu0 0
    %535 = vmatprep.subr.bf16.mxu0 0
    %536 = vmatpush2.bf16.msra.mxu0 0
    %537 = vmatprep.subr.bf16.mxu0 0
    %538 = vmatpush2.bf16.msra.mxu0 0
    %539 = vmatprep.subr.bf16.mxu0 0
    %540 = vmatpush2.bf16.msra.mxu0 0
    %541 = vmatprep.subr.bf16.mxu0 0
    %542 = vmatpush2.bf16.msra.mxu0 0
    %543 = vmatprep.subr.bf16.mxu0 0
    %544 = vmatpush2.bf16.msra.mxu0 0
    %545 = vmatprep.mubr.bf16.mxu0 0
    %546 = vmatmul.mubr.bf16.gmra.mxu0 %v508
    %v547 = vpop.f32.mrf.mxu0
    %v548 = vadd.f32 %v483, %v547
    %v549 = vpop.f32.mrf.mxu0
    %v550 = vpop.f32.mrf.mxu0
    %v551 = vadd.f32 %v483, %v550
    %v552 = vpop.f32.mrf.mxu0
    %553 = vmatprep.mubr.bf16.mxu0 0
    %554 = vmatmul.mubr.bf16.gmra.mxu0 %v511
    %v555 = vpop.f32.mrf.mxu0
    %v556 = vadd.f32 %v483, %v555
    %v557 = vpop.f32.mrf.mxu0
    %v558 = vpop.f32.mrf.mxu0
    %v559 = vadd.f32 %v483, %v558
    %v560 = vpop.f32.mrf.mxu0
    %561 = vdwg.mxu0
    %v562 = vpack.c.bf16 %v551, %v548
    %v563 = vpack.c.bf16 %v559, %v556
    %566 = vrot.lane.b32.xlu0 %v562, 32
    %v567 = vpop.permute.xlu0 %566
    %568 = vrot.lane.b32.xlu0 %v563, 32
    %v569 = vpop.permute.xlu0 %568
    %v572 = vsel %vm377, %v562, %v567
    %v576 = vsel %vm377, %v563, %v569
    %v578 = vld [vmem:[%s10] sm:$0xf]
    %v579 = vld [vmem:[%s10 + $0x4] sm:$0xf]
    %v580 = vld [vmem:[%s10 + $0x8] sm:$0xf]
    %v581 = vld [vmem:[%s10 + $0xc] sm:$0xf]
    %v582 = vld [vmem:[%s10 + $0x10] sm:$0xf]
    %v583 = vld [vmem:[%s10 + $0x14] sm:$0xf]
    %v584 = vld [vmem:[%s10 + $0x18] sm:$0xf]
    %v585 = vld [vmem:[%s10 + $0x1c] sm:$0xf]
    %v586 = vld [vmem:[%s10 + $0x20] sm:$0xf]
    %v587 = vld [vmem:[%s10 + $0x24] sm:$0xf]
    %v588 = vld [vmem:[%s10 + $0x28] sm:$0xf]
    %v589 = vld [vmem:[%s10 + $0x2c] sm:$0xf]
    %v590 = vld [vmem:[%s10 + $0x30] sm:$0xf]
    %v591 = vld [vmem:[%s10 + $0x34] sm:$0xf]
    %v592 = vld [vmem:[%s10 + $0x38] sm:$0xf]
    %v593 = vld [vmem:[%s10 + $0x3c] sm:$0xf]
    %v610 = vunpack.c.l.b16 %v578
    %v611 = vunpack.c.l.b16 %v579
    %v612 = vunpack.c.l.b16 %v580
    %v613 = vunpack.c.l.b16 %v581
    %v614 = vunpack.c.l.b16 %v582
    %v615 = vunpack.c.l.b16 %v583
    %v616 = vunpack.c.l.b16 %v584
    %v617 = vunpack.c.l.b16 %v585
    %v618 = vunpack.c.l.b16 %v586
    %v619 = vunpack.c.l.b16 %v587
    %v620 = vunpack.c.l.b16 %v588
    %v621 = vunpack.c.l.b16 %v589
    %v622 = vunpack.c.l.b16 %v590
    %v623 = vunpack.c.l.b16 %v591
    %v624 = vunpack.c.l.b16 %v592
    %v625 = vunpack.c.l.b16 %v593
    %v626 = vpack.c.b16 %v611, %v610
    %v627 = vpack.c.b16 %v613, %v612
    %v628 = vpack.c.b16 %v615, %v614
    %v629 = vpack.c.b16 %v617, %v616
    %v630 = vpack.c.b16 %v619, %v618
    %v631 = vpack.c.b16 %v621, %v620
    %v632 = vpack.c.b16 %v623, %v622
    %v633 = vpack.c.b16 %v625, %v624
    %v642 = vmul.bf16 %v572, %v626
    %v643 = vmul.bf16 %v576, %v627
    %v644 = vmul.bf16 %v572, %v628
    %v645 = vmul.bf16 %v576, %v629
    %v646 = vmul.bf16 %v572, %v630
    %v647 = vmul.bf16 %v576, %v631
    %v648 = vmul.bf16 %v572, %v632
    %v649 = vmul.bf16 %v576, %v633
    %v650 = vpack.c.bf16 %v150, %v150
    %v652 = vsel %vm111, %v650, 0
    %654 = vmatprep.subr.bf16.mxu0 0
    %655 = vmatpush1.bf16.msra.mxu0 0
    %656 = vmatprep.subr.bf16.mxu0 0
    %657 = vmatpush1.bf16.msra.mxu0 0
    %658 = vmatprep.subr.bf16.mxu0 0
    %659 = vmatpush1.bf16.msra.mxu0 0
    %660 = vmatprep.subr.bf16.mxu0 0
    %661 = vmatpush1.bf16.msra.mxu0 0
    %662 = vmatprep.subr.bf16.mxu0 0
    %663 = vmatpush1.bf16.msra.mxu0 %v469
    %664 = vmatprep.subr.bf16.mxu0 0
    %665 = vmatpush1.bf16.msra.mxu0 %v468
    %666 = vmatprep.subr.bf16.mxu0 0
    %667 = vmatpush1.bf16.msra.mxu0 %v467
    %668 = vmatprep.subr.bf16.mxu0 0
    %669 = vmatpush1.bf16.msra.mxu0 %v466
    %670 = vmatprep.subr.bf16.mxu0 0
    %671 = vmatpush2.bf16.msra.mxu0 0
    %672 = vmatprep.subr.bf16.mxu0 0
    %673 = vmatpush2.bf16.msra.mxu0 0
    %674 = vmatprep.subr.bf16.mxu0 0
    %675 = vmatpush2.bf16.msra.mxu0 0
    %676 = vmatprep.subr.bf16.mxu0 0
    %677 = vmatpush2.bf16.msra.mxu0 0
    %678 = vmatprep.subr.bf16.mxu0 0
    %679 = vmatpush2.bf16.msra.mxu0 0
    %680 = vmatprep.subr.bf16.mxu0 0
    %681 = vmatpush2.bf16.msra.mxu0 0
    %682 = vmatprep.subr.bf16.mxu0 0
    %683 = vmatpush2.bf16.msra.mxu0 0
    %684 = vmatprep.subr.bf16.mxu0 0
    %685 = vmatpush2.bf16.msra.mxu0 0
    %686 = vmatprep.mubr.bf16.mxu0 0
    %687 = vmatmul.mubr.bf16.gmra.mxu0 %v652
    %v688 = vpop.f32.mrf.mxu0
    %v689 = vadd.f32 0.0, %v688
    %v690 = vpop.f32.mrf.mxu0
    %v691 = vpop.f32.mrf.mxu0
    %v692 = vpop.f32.mrf.mxu0
    %693 = vdwg.mxu0
    %694 = vmax.xlane.f32.xlu0 %v689
    %v695 = vpop.xlane.xlu0 %694
    %v696 = vsub.f32 %v689, %v695
    %v697 = vmul.f32 %v696, 1.442695
    %v698 = vpow.pop %v697
    %v699 = vpack.c.bf16 %v698, %v698
    %700 = vmatprep.subr.bf16.mxu0 0
    %701 = vmatpush1.bf16.msra.mxu0 %v649
    %702 = vmatprep.subr.bf16.mxu0 0
    %703 = vmatpush1.bf16.msra.mxu0 %v648
    %704 = vmatprep.subr.bf16.mxu0 0
    %705 = vmatpush1.bf16.msra.mxu0 %v647
    %706 = vmatprep.subr.bf16.mxu0 0
    %707 = vmatpush1.bf16.msra.mxu0 %v646
    %708 = vmatprep.subr.bf16.mxu0 0
    %709 = vmatpush1.bf16.msra.mxu0 %v645
    %710 = vmatprep.subr.bf16.mxu0 0
    %711 = vmatpush1.bf16.msra.mxu0 %v644
    %712 = vmatprep.subr.bf16.mxu0 0
    %713 = vmatpush1.bf16.msra.mxu0 %v643
    %714 = vmatprep.subr.bf16.mxu0 0
    %715 = vmatpush1.bf16.msra.mxu0 %v642
    %716 = vmatprep.subr.bf16.mxu0 0
    %717 = vmatpush2.bf16.msra.mxu0 0
    %718 = vmatprep.subr.bf16.mxu0 0
    %719 = vmatpush2.bf16.msra.mxu0 0
    %720 = vmatprep.subr.bf16.mxu0 0
    %721 = vmatpush2.bf16.msra.mxu0 0
    %722 = vmatprep.subr.bf16.mxu0 0
    %723 = vmatpush2.bf16.msra.mxu0 0
    %724 = vmatprep.subr.bf16.mxu0 0
    %725 = vmatpush2.bf16.msra.mxu0 0
    %726 = vmatprep.subr.bf16.mxu0 0
    %727 = vmatpush2.bf16.msra.mxu0 0
    %728 = vmatprep.subr.bf16.mxu0 0
    %729 = vmatpush2.bf16.msra.mxu0 0
    %730 = vmatprep.subr.bf16.mxu0 0
    %731 = vmatpush2.bf16.msra.mxu0 0
    %732 = vmatprep.mubr.bf16.mxu0 0
    %733 = vmatmul.mubr.bf16.gmra.mxu0 %v699
    %v734 = vpop.f32.mrf.mxu0
    %v735 = vadd.f32 0.0, %v734
    %v736 = vpop.f32.mrf.mxu0
    %v737 = vpop.f32.mrf.mxu0
    %v738 = vpop.f32.mrf.mxu0
    %739 = vdwg.mxu0
    %740 = vmatprep.subr.bf16.mxu0 0
    %741 = vmatpush1.bf16.msra.mxu0 %v633
    %742 = vmatprep.subr.bf16.mxu0 0
    %743 = vmatpush1.bf16.msra.mxu0 %v632
    %744 = vmatprep.subr.bf16.mxu0 0
    %745 = vmatpush1.bf16.msra.mxu0 %v631
    %746 = vmatprep.subr.bf16.mxu0 0
    %747 = vmatpush1.bf16.msra.mxu0 %v630
    %748 = vmatprep.subr.bf16.mxu0 0
    %749 = vmatpush1.bf16.msra.mxu0 %v629
    %750 = vmatprep.subr.bf16.mxu0 0
    %751 = vmatpush1.bf16.msra.mxu0 %v628
    %752 = vmatprep.subr.bf16.mxu0 0
    %753 = vmatpush1.bf16.msra.mxu0 %v627
    %754 = vmatprep.subr.bf16.mxu0 0
    %755 = vmatpush1.bf16.msra.mxu0 %v626
    %756 = vmatprep.subr.bf16.mxu0 0
    %757 = vmatpush2.bf16.msra.mxu0 0
    %758 = vmatprep.subr.bf16.mxu0 0
    %759 = vmatpush2.bf16.msra.mxu0 0
    %760 = vmatprep.subr.bf16.mxu0 0
    %761 = vmatpush2.bf16.msra.mxu0 0
    %762 = vmatprep.subr.bf16.mxu0 0
    %763 = vmatpush2.bf16.msra.mxu0 0
    %764 = vmatprep.subr.bf16.mxu0 0
    %765 = vmatpush2.bf16.msra.mxu0 0
    %766 = vmatprep.subr.bf16.mxu0 0
    %767 = vmatpush2.bf16.msra.mxu0 0
    %768 = vmatprep.subr.bf16.mxu0 0
    %769 = vmatpush2.bf16.msra.mxu0 0
    %770 = vmatprep.subr.bf16.mxu0 0
    %771 = vmatpush2.bf16.msra.mxu0 0
    %772 = vmatprep.mubr.bf16.mxu0 0
    %773 = vmatmul.mubr.bf16.gmra.mxu0 %v699
    %v774 = vpop.f32.mrf.mxu0
    %v775 = vadd.f32 0.0, %v774
    %v776 = vpop.f32.mrf.mxu0
    %v777 = vpop.f32.mrf.mxu0
    %v778 = vpop.f32.mrf.mxu0
    %779 = vdwg.mxu0
    %v780 = vrcp.pop %v775
    %v781 = vmul.f32 %v735, %v780
    %v782 = vpack.c.bf16 %v781, %v781
    %v783 = vld [vmem:[%s11] sm:$0xf]
    %v784 = vld [vmem:[%s11 + $0x4] sm:$0xf]
    %v785 = vld [vmem:[%s11 + $0x8] sm:$0xf]
    %v786 = vld [vmem:[%s11 + $0xc] sm:$0xf]
    %v787 = vld [vmem:[%s11 + $0x10] sm:$0xf]
    %v788 = vld [vmem:[%s11 + $0x14] sm:$0xf]
    %v789 = vld [vmem:[%s11 + $0x18] sm:$0xf]
    %v790 = vld [vmem:[%s11 + $0x1c] sm:$0xf]
    %v791 = vld [vmem:[%s12] sm:$0x1]
    %v793 = vlaneseq
    %v794 = vshrl.u32 %v793, 7
    %v795 = vsub.s32 0, %v794
    %v796 = vrot.slane %v791, %v795
    %v806 = vunpack.c.l.b16 %v783
    %v807 = vunpack.c.l.b16 %v784
    %v808 = vunpack.c.l.b16 %v785
    %v809 = vunpack.c.l.b16 %v786
    %v810 = vunpack.c.l.b16 %v787
    %v811 = vunpack.c.l.b16 %v788
    %v812 = vunpack.c.l.b16 %v789
    %v813 = vunpack.c.l.b16 %v790
    %v814 = vpack.c.b16 %v807, %v806
    %v815 = vpack.c.b16 %v809, %v808
    %v816 = vpack.c.b16 %v811, %v810
    %v817 = vpack.c.b16 %v813, %v812
    %v823 = vsel %vm111, %v782, 0
    %825 = vmatprep.subr.bf16.mxu0 0
    %826 = vmatpush1.bf16.msra.mxu0 0
    %827 = vmatprep.subr.bf16.mxu0 0
    %828 = vmatpush1.bf16.msra.mxu0 0
    %829 = vmatprep.subr.bf16.mxu0 0
    %830 = vmatpush1.bf16.msra.mxu0 0
    %831 = vmatprep.subr.bf16.mxu0 0
    %832 = vmatpush1.bf16.msra.mxu0 0
    %833 = vmatprep.subr.bf16.mxu0 0
    %834 = vmatpush1.bf16.msra.mxu0 %v817
    %835 = vmatprep.subr.bf16.mxu0 0
    %836 = vmatpush1.bf16.msra.mxu0 %v816
    %837 = vmatprep.subr.bf16.mxu0 0
    %838 = vmatpush1.bf16.msra.mxu0 %v815
    %839 = vmatprep.subr.bf16.mxu0 0
    %840 = vmatpush1.bf16.msra.mxu0 %v814
    %841 = vmatprep.subr.bf16.mxu0 0
    %842 = vmatpush2.bf16.msra.mxu0 0
    %843 = vmatprep.subr.bf16.mxu0 0
    %844 = vmatpush2.bf16.msra.mxu0 0
    %845 = vmatprep.subr.bf16.mxu0 0
    %846 = vmatpush2.bf16.msra.mxu0 0
    %847 = vmatprep.subr.bf16.mxu0 0
    %848 = vmatpush2.bf16.msra.mxu0 0
    %849 = vmatprep.subr.bf16.mxu0 0
    %850 = vmatpush2.bf16.msra.mxu0 0
    %851 = vmatprep.subr.bf16.mxu0 0
    %852 = vmatpush2.bf16.msra.mxu0 0
    %853 = vmatprep.subr.bf16.mxu0 0
    %854 = vmatpush2.bf16.msra.mxu0 0
    %855 = vmatprep.subr.bf16.mxu0 0
    %856 = vmatpush2.bf16.msra.mxu0 0
    %857 = vmatprep.mubr.bf16.mxu0 0
    %858 = vmatmul.mubr.bf16.gmra.mxu0 %v823
    %v859 = vpop.f32.mrf.mxu0
    %v860 = vadd.f32 %v796, %v859
    %v861 = vpop.f32.mrf.mxu0
    %v862 = vpop.f32.mrf.mxu0
    %v863 = vpop.f32.mrf.mxu0
    %864 = vdwg.mxu0
    %v865 = vadd.f32 %v70, %v860
    %v866 = vld [vmem:[%s17] sm:$0x1]
    %v867 = vld [vmem:[%s18] sm:$0x1]
    %v868 = vsel %vm377, %v865, 0.0
    %869 = vadd.xlane.f32.xlu0 %v868
    %v870 = vpop.xlane.xlu0 %869
    %v871 = vrcp.pop 32.0
    %v872 = vmul.f32 %v870, %v871
    %v873 = vsub.f32 %v865, %v872
    %v874 = vmul.f32 %v873, %v873
    %v875 = vsel %vm377, %v874, 0.0
    %876 = vadd.xlane.f32.xlu0 %v875
    %v877 = vpop.xlane.xlu0 %876
    %v878 = vmul.f32 %v877, %v871
    %v879 = vadd.f32 %v878, 1e-05
    %v880 = vrsqrt.pop %v879
    %v881 = vmul.f32 %v873, %v880
    %883 = vrot.lane.b32.xlu0 %v865, 96
    %v884 = vpop.permute.xlu0 %883
    %v886 = vsel %vm377, %v884, 0.0
    %887 = vadd.xlane.f32.xlu0 %v886
    %v888 = vpop.xlane.xlu0 %887
    %v889 = vmul.f32 %v888, %v871
    %v890 = vsub.f32 %v865, %v889
    %v891 = vmul.f32 %v890, %v890
    %893 = vrot.lane.b32.xlu0 %v891, 96
    %v894 = vpop.permute.xlu0 %893
    %v896 = vsel %vm377, %v894, 0.0
    %897 = vadd.xlane.f32.xlu0 %v896
    %v898 = vpop.xlane.xlu0 %897
    %v899 = vmul.f32 %v898, %v871
    %v900 = vadd.f32 %v899, 1e-05
    %v901 = vrsqrt.pop %v900
    %v902 = vmul.f32 %v890, %v901
    %v903 = vsel %vm377, %v881, %v902
    %v905 = vlaneseq
    %v906 = vshrl.u32 %v905, 7
    %v907 = vsub.s32 0, %v906
    %v908 = vrot.slane %v866, %v907
    %v910 = vmul.f32 %v903, %v908
    %v912 = vlaneseq
    %v913 = vshrl.u32 %v912, 7
    %v914 = vsub.s32 0, %v913
    %v915 = vrot.slane %v867, %v914
    %v917 = vadd.f32 %v910, %v915
    %v918 = vpack.c.bf16 %v917, %v917
    %v919 = vld [vmem:[%s13] sm:$0xff]
    %v920 = vld [vmem:[%s13 + $0x8] sm:$0xff]
    %v921 = vld [vmem:[%s13 + $0x10] sm:$0xff]
    %v922 = vld [vmem:[%s13 + $0x18] sm:$0xff]
    %v923 = vld [vmem:[%s13 + $0x20] sm:$0xff]
    %v924 = vld [vmem:[%s13 + $0x28] sm:$0xff]
    %v925 = vld [vmem:[%s13 + $0x30] sm:$0xff]
    %v926 = vld [vmem:[%s13 + $0x38] sm:$0xff]
    %v927 = vld [vmem:[%s14] sm:$0x3]
    %v929 = vlaneseq
    %v930 = vshrl.u32 %v929, 7
    %v931 = vsub.s32 0, %v930
    %v932 = vrot.slane %v927, %v931
    %v933 = vlaneseq
    %v934 = vshrl.u32 %v933, 7
    %v935 = vsub.s32 1, %v934
    %v936 = vrot.slane %v927, %v935
    %v947 = vunpack.c.l.b16 %v919
    %v948 = vunpack.c.h.b16 %v919
    %v949 = vunpack.c.l.b16 %v920
    %v950 = vunpack.c.h.b16 %v920
    %v951 = vunpack.c.l.b16 %v921
    %v952 = vunpack.c.h.b16 %v921
    %v953 = vunpack.c.l.b16 %v922
    %v954 = vunpack.c.h.b16 %v922
    %v955 = vunpack.c.l.b16 %v923
    %v956 = vunpack.c.h.b16 %v923
    %v957 = vunpack.c.l.b16 %v924
    %v958 = vunpack.c.h.b16 %v924
    %v959 = vunpack.c.l.b16 %v925
    %v960 = vunpack.c.h.b16 %v925
    %v961 = vunpack.c.l.b16 %v926
    %v962 = vunpack.c.h.b16 %v926
    %v963 = vpack.c.b16 %v949, %v947
    %v964 = vpack.c.b16 %v950, %v948
    %v965 = vpack.c.b16 %v953, %v951
    %v966 = vpack.c.b16 %v954, %v952
    %v967 = vpack.c.b16 %v957, %v955
    %v968 = vpack.c.b16 %v958, %v956
    %v969 = vpack.c.b16 %v961, %v959
    %v970 = vpack.c.b16 %v962, %v960
    %v980 = vsel %vm111, %v918, 0
    %982 = vmatprep.subr.bf16.mxu0 0
    %983 = vmatpush1.bf16.msra.mxu0 0
    %984 = vmatprep.subr.bf16.mxu0 0
    %985 = vmatpush1.bf16.msra.mxu0 0
    %986 = vmatprep.subr.bf16.mxu0 0
    %987 = vmatpush1.bf16.msra.mxu0 0
    %988 = vmatprep.subr.bf16.mxu0 0
    %989 = vmatpush1.bf16.msra.mxu0 0
    %990 = vmatprep.subr.bf16.mxu0 %v970
    %991 = vmatpush1.bf16.msra.mxu0 %v969
    %992 = vmatprep.subr.bf16.mxu0 %v968
    %993 = vmatpush1.bf16.msra.mxu0 %v967
    %994 = vmatprep.subr.bf16.mxu0 %v966
    %995 = vmatpush1.bf16.msra.mxu0 %v965
    %996 = vmatprep.subr.bf16.mxu0 %v964
    %997 = vmatpush1.bf16.msra.mxu0 %v963
    %998 = vmatprep.subr.bf16.mxu0 0
    %999 = vmatpush2.bf16.msra.mxu0 0
    %1000 = vmatprep.subr.bf16.mxu0 0
    %1001 = vmatpush2.bf16.msra.mxu0 0
    %1002 = vmatprep.subr.bf16.mxu0 0
    %1003 = vmatpush2.bf16.msra.mxu0 0
    %1004 = vmatprep.subr.bf16.mxu0 0
    %1005 = vmatpush2.bf16.msra.mxu0 0
    %1006 = vmatprep.subr.bf16.mxu0 0
    %1007 = vmatpush2.bf16.msra.mxu0 0
    %1008 = vmatprep.subr.bf16.mxu0 0
    %1009 = vmatpush2.bf16.msra.mxu0 0
    %1010 = vmatprep.subr.bf16.mxu0 0
    %1011 = vmatpush2.bf16.msra.mxu0 0
    %1012 = vmatprep.subr.bf16.mxu0 0
    %1013 = vmatpush2.bf16.msra.mxu0 0
    %1014 = vmatprep.mubr.bf16.mxu0 0
    %1015 = vmatmul.mubr.bf16.gmra.mxu0 %v980
    %v1016 = vpop.f32.mrf.mxu0
    %v1017 = vadd.f32 %v932, %v1016
    %v1018 = vpop.f32.mrf.mxu0
    %v1019 = vadd.f32 %v936, %v1018
    %v1020 = vpop.f32.mrf.mxu0
    %v1021 = vpop.f32.mrf.mxu0
    %1022 = vdwg.mxu0
    %v1023 = vmul.f32 %v1017, 0.5
    %v1024 = vmul.f32 %v1019, 0.5
    %v1025 = vmul.f32 %v1017, 0.70710677
    %v1026 = vmul.f32 %v1019, 0.70710677
    %vm1027 = vcmp.ge.f32.partialorder %v1025, 0.0
    %vm1028 = vcmp.ge.f32.partialorder %v1026, 0.0
    %v1029 = vsel %vm1027, 1.0, -1.0
    %v1030 = vsel %vm1028, 1.0, -1.0
    %v1031 = vand.u32 2147483647, %v1025
    %v1032 = vand.u32 2147483647, %v1026
    %v1033 = vmul.f32 %v1031, 0.3275911
    %v1034 = vmul.f32 %v1032, 0.3275911
    %v1035 = vadd.f32 %v1033, 1.0
    %v1036 = vadd.f32 %v1034, 1.0
    %v1037 = vrcp.pop %v1035
    %v1038 = vmul.f32 1.0, %v1037
    %v1039 = vrcp.pop %v1036
    %v1040 = vmul.f32 1.0, %v1039
    %v1041 = vmul.f32 %v1038, 1.0614054
    %v1042 = vmul.f32 %v1040, 1.0614054
    %v1043 = vadd.f32 %v1041, -1.4531521
    %v1044 = vadd.f32 %v1042, -1.4531521
    %v1045 = vmul.f32 %v1038, %v1043
    %v1046 = vmul.f32 %v1040, %v1044
    %v1047 = vadd.f32 %v1045, 1.4214138
    %v1048 = vadd.f32 %v1046, 1.4214138
    %v1049 = vmul.f32 %v1038, %v1047
    %v1050 = vmul.f32 %v1040, %v1048
    %v1051 = vadd.f32 %v1049, -0.28449672
    %v1052 = vadd.f32 %v1050, -0.28449672
    %v1053 = vmul.f32 %v1038, %v1051
    %v1054 = vmul.f32 %v1040, %v1052
    %v1055 = vadd.f32 %v1053, 0.2548296
    %v1056 = vadd.f32 %v1054, 0.2548296
    %v1057 = vmul.f32 %v1038, %v1055
    %v1058 = vmul.f32 %v1040, %v1056
    %v1059 = vsub.f32 0.0, %v1031
    %v1060 = vsub.f32 0.0, %v1032
    %v1061 = vmul.f32 %v1059, %v1031
    %v1062 = vmul.f32 %v1060, %v1032
    %v1063 = vmul.f32 %v1061, 1.442695
    %v1064 = vpow.pop %v1063
    %v1065 = vmul.f32 %v1062, 1.442695
    %v1066 = vpow.pop %v1065
    %v1067 = vmul.f32 %v1057, %v1064
    %v1068 = vmul.f32 %v1058, %v1066
    %v1069 = vsub.f32 1.0, %v1067
    %v1070 = vsub.f32 1.0, %v1068
    %v1071 = vmul.f32 %v1029, %v1069
    %v1072 = vmul.f32 %v1030, %v1070
    %v1073 = vadd.f32 %v1071, 1.0
    %v1074 = vadd.f32 %v1072, 1.0
    %v1075 = vmul.f32 %v1023, %v1073
    %v1076 = vmul.f32 %v1024, %v1074
    %v1077 = vpack.c.bf16 %v1075, %v1075
    %v1078 = vpack.c.bf16 %v1076, %v1076
    %v1079 = vld [vmem:[%s15] sm:$0xf]
    %v1080 = vld [vmem:[%s15 + $0x4] sm:$0xf]
    %v1081 = vld [vmem:[%s15 + $0x8] sm:$0xf]
    %v1082 = vld [vmem:[%s15 + $0xc] sm:$0xf]
    %v1083 = vld [vmem:[%s15 + $0x10] sm:$0xf]
    %v1084 = vld [vmem:[%s15 + $0x14] sm:$0xf]
    %v1085 = vld [vmem:[%s15 + $0x18] sm:$0xf]
    %v1086 = vld [vmem:[%s15 + $0x1c] sm:$0xf]
    %v1087 = vld [vmem:[%s15 + $0x20] sm:$0xf]
    %v1088 = vld [vmem:[%s15 + $0x24] sm:$0xf]
    %v1089 = vld [vmem:[%s15 + $0x28] sm:$0xf]
    %v1090 = vld [vmem:[%s15 + $0x2c] sm:$0xf]
    %v1091 = vld [vmem:[%s15 + $0x30] sm:$0xf]
    %v1092 = vld [vmem:[%s15 + $0x34] sm:$0xf]
    %v1093 = vld [vmem:[%s15 + $0x38] sm:$0xf]
    %v1094 = vld [vmem:[%s15 + $0x3c] sm:$0xf]
    %v1095 = vld [vmem:[%s15 + $0x40] sm:$0xf]
    %v1096 = vld [vmem:[%s15 + $0x44] sm:$0xf]
    %v1097 = vld [vmem:[%s15 + $0x48] sm:$0xf]
    %v1098 = vld [vmem:[%s15 + $0x4c] sm:$0xf]
    %v1099 = vld [vmem:[%s15 + $0x50] sm:$0xf]
    %v1100 = vld [vmem:[%s15 + $0x54] sm:$0xf]
    %v1101 = vld [vmem:[%s15 + $0x58] sm:$0xf]
    %v1102 = vld [vmem:[%s15 + $0x5c] sm:$0xf]
    %v1103 = vld [vmem:[%s15 + $0x60] sm:$0xf]
    %v1104 = vld [vmem:[%s15 + $0x64] sm:$0xf]
    %v1105 = vld [vmem:[%s15 + $0x68] sm:$0xf]
    %v1106 = vld [vmem:[%s15 + $0x6c] sm:$0xf]
    %v1107 = vld [vmem:[%s15 + $0x70] sm:$0xf]
    %v1108 = vld [vmem:[%s15 + $0x74] sm:$0xf]
    %v1109 = vld [vmem:[%s15 + $0x78] sm:$0xf]
    %v1110 = vld [vmem:[%s15 + $0x7c] sm:$0xf]
    %v1111 = vld [vmem:[%s16] sm:$0x1]
    %v1113 = vlaneseq
    %v1114 = vshrl.u32 %v1113, 7
    %v1115 = vsub.s32 0, %v1114
    %v1116 = vrot.slane %v1111, %v1115
    %v1150 = vunpack.c.l.b16 %v1079
    %v1151 = vunpack.c.l.b16 %v1080
    %v1152 = vunpack.c.l.b16 %v1081
    %v1153 = vunpack.c.l.b16 %v1082
    %v1154 = vunpack.c.l.b16 %v1083
    %v1155 = vunpack.c.l.b16 %v1084
    %v1156 = vunpack.c.l.b16 %v1085
    %v1157 = vunpack.c.l.b16 %v1086
    %v1158 = vunpack.c.l.b16 %v1087
    %v1159 = vunpack.c.l.b16 %v1088
    %v1160 = vunpack.c.l.b16 %v1089
    %v1161 = vunpack.c.l.b16 %v1090
    %v1162 = vunpack.c.l.b16 %v1091
    %v1163 = vunpack.c.l.b16 %v1092
    %v1164 = vunpack.c.l.b16 %v1093
    %v1165 = vunpack.c.l.b16 %v1094
    %v1166 = vunpack.c.l.b16 %v1095
    %v1167 = vunpack.c.l.b16 %v1096
    %v1168 = vunpack.c.l.b16 %v1097
    %v1169 = vunpack.c.l.b16 %v1098
    %v1170 = vunpack.c.l.b16 %v1099
    %v1171 = vunpack.c.l.b16 %v1100
    %v1172 = vunpack.c.l.b16 %v1101
    %v1173 = vunpack.c.l.b16 %v1102
    %v1174 = vunpack.c.l.b16 %v1103
    %v1175 = vunpack.c.l.b16 %v1104
    %v1176 = vunpack.c.l.b16 %v1105
    %v1177 = vunpack.c.l.b16 %v1106
    %v1178 = vunpack.c.l.b16 %v1107
    %v1179 = vunpack.c.l.b16 %v1108
    %v1180 = vunpack.c.l.b16 %v1109
    %v1181 = vunpack.c.l.b16 %v1110
    %v1182 = vpack.c.b16 %v1151, %v1150
    %v1183 = vpack.c.b16 %v1153, %v1152
    %v1184 = vpack.c.b16 %v1155, %v1154
    %v1185 = vpack.c.b16 %v1157, %v1156
    %v1186 = vpack.c.b16 %v1159, %v1158
    %v1187 = vpack.c.b16 %v1161, %v1160
    %v1188 = vpack.c.b16 %v1163, %v1162
    %v1189 = vpack.c.b16 %v1165, %v1164
    %v1190 = vpack.c.b16 %v1167, %v1166
    %v1191 = vpack.c.b16 %v1169, %v1168
    %v1192 = vpack.c.b16 %v1171, %v1170
    %v1193 = vpack.c.b16 %v1173, %v1172
    %v1194 = vpack.c.b16 %v1175, %v1174
    %v1195 = vpack.c.b16 %v1177, %v1176
    %v1196 = vpack.c.b16 %v1179, %v1178
    %v1197 = vpack.c.b16 %v1181, %v1180
    %1214 = vmatprep.subr.bf16.mxu0 0
    %1215 = vmatpush1.bf16.msra.mxu0 %v1189
    %1216 = vmatprep.subr.bf16.mxu0 0
    %1217 = vmatpush1.bf16.msra.mxu0 %v1188
    %1218 = vmatprep.subr.bf16.mxu0 0
    %1219 = vmatpush1.bf16.msra.mxu0 %v1187
    %1220 = vmatprep.subr.bf16.mxu0 0
    %1221 = vmatpush1.bf16.msra.mxu0 %v1186
    %1222 = vmatprep.subr.bf16.mxu0 0
    %1223 = vmatpush1.bf16.msra.mxu0 %v1185
    %1224 = vmatprep.subr.bf16.mxu0 0
    %1225 = vmatpush1.bf16.msra.mxu0 %v1184
    %1226 = vmatprep.subr.bf16.mxu0 0
    %1227 = vmatpush1.bf16.msra.mxu0 %v1183
    %1228 = vmatprep.subr.bf16.mxu0 0
    %1229 = vmatpush1.bf16.msra.mxu0 %v1182
    %1230 = vmatprep.subr.bf16.mxu0 0
    %1231 = vmatpush2.bf16.msra.mxu0 %v1197
    %1232 = vmatprep.subr.bf16.mxu0 0
    %1233 = vmatpush2.bf16.msra.mxu0 %v1196
    %1234 = vmatprep.subr.bf16.mxu0 0
    %1235 = vmatpush2.bf16.msra.mxu0 %v1195
    %1236 = vmatprep.subr.bf16.mxu0 0
    %1237 = vmatpush2.bf16.msra.mxu0 %v1194
    %1238 = vmatprep.subr.bf16.mxu0 0
    %1239 = vmatpush2.bf16.msra.mxu0 %v1193
    %1240 = vmatprep.subr.bf16.mxu0 0
    %1241 = vmatpush2.bf16.msra.mxu0 %v1192
    %1242 = vmatprep.subr.bf16.mxu0 0
    %1243 = vmatpush2.bf16.msra.mxu0 %v1191
    %1244 = vmatprep.subr.bf16.mxu0 0
    %1245 = vmatpush2.bf16.msra.mxu0 %v1190
    %1246 = vmatprep.mubr.bf16.mxu0 %v1078
    %1247 = vmatmul.mubr.bf16.gmra.mxu0 %v1077
    %v1248 = vpop.f32.mrf.mxu0
    %v1249 = vadd.f32 %v1116, %v1248
    %v1250 = vpop.f32.mrf.mxu0
    %v1251 = vpop.f32.mrf.mxu0
    %v1252 = vpop.f32.mrf.mxu0
    %1253 = vdwg.mxu0
    %v1254 = vadd.f32 %v917, %v1249
    %v1255 = vld [vmem:[%s19] sm:$0x1]
    %v1256 = vld [vmem:[%s20] sm:$0x1]
    %v1257 = vsel %vm377, %v1254, 0.0
    %1258 = vadd.xlane.f32.xlu0 %v1257
    %v1259 = vpop.xlane.xlu0 %1258
    %v1260 = vmul.f32 %v1259, %v871
    %v1261 = vsub.f32 %v1254, %v1260
    %v1262 = vmul.f32 %v1261, %v1261
    %v1263 = vsel %vm377, %v1262, 0.0
    %1264 = vadd.xlane.f32.xlu0 %v1263
    %v1265 = vpop.xlane.xlu0 %1264
    %v1266 = vmul.f32 %v1265, %v871
    %v1267 = vadd.f32 %v1266, 1e-05
    %v1268 = vrsqrt.pop %v1267
    %v1269 = vmul.f32 %v1261, %v1268
    %1271 = vrot.lane.b32.xlu0 %v1254, 96
    %v1272 = vpop.permute.xlu0 %1271
    %v1274 = vsel %vm377, %v1272, 0.0
    %1275 = vadd.xlane.f32.xlu0 %v1274
    %v1276 = vpop.xlane.xlu0 %1275
    %v1277 = vmul.f32 %v1276, %v871
    %v1278 = vsub.f32 %v1254, %v1277
    %v1279 = vmul.f32 %v1278, %v1278
    %1281 = vrot.lane.b32.xlu0 %v1279, 96
    %v1282 = vpop.permute.xlu0 %1281
    %v1284 = vsel %vm377, %v1282, 0.0
    %1285 = vadd.xlane.f32.xlu0 %v1284
    %v1286 = vpop.xlane.xlu0 %1285
    %v1287 = vmul.f32 %v1286, %v871
    %v1288 = vadd.f32 %v1287, 1e-05
    %v1289 = vrsqrt.pop %v1288
    %v1290 = vmul.f32 %v1278, %v1289
    %v1291 = vsel %vm377, %v1269, %v1290
    %v1293 = vlaneseq
    %v1294 = vshrl.u32 %v1293, 7
    %v1295 = vsub.s32 0, %v1294
    %v1296 = vrot.slane %v1255, %v1295
    %v1298 = vmul.f32 %v1291, %v1296
    %v1300 = vlaneseq
    %v1301 = vshrl.u32 %v1300, 7
    %v1302 = vsub.s32 0, %v1301
    %v1303 = vrot.slane %v1256, %v1302
    %v1305 = vadd.f32 %v1298, %v1303
    %1306 = vst.msk [vmem:[#allocation2] sm:$0xff] %vm111, %v1305
    // Predicated region
    $region86: #{tpu_custom_call.1} parent=1 // pred_check
      _
    $region87: #{tpu_custom_call.1} parent=1 // pred_check_branch
      %1308 = sbr.rel (0) target = $region89
    $region88: #{tpu_custom_call.1} parent=1 // pred_region
      %s1310 = ssub.s32 128, 128
      %1311 = vsyncadd [#allocation3], %s1310
      %s1313 = sshll.u32 [#allocation2], 4
      %s1314 = int_to_ptr.vmem [resolvable:$true] %s1313
      %1316 = dma.vmem_to_hbm [thread:$0]  %s1314, 128, %s21, [#allocation3]
    $region89: #{tpu_custom_call.1} parent=1 // pred_fallthru
      _
    // Predicated region
    $region90: #{tpu_custom_call.1} parent=1 // pred_check
      _
    $region91: #{tpu_custom_call.1} parent=1 // pred_check_branch
      %1318 = sbr.rel (0) target = $region93
    $region92: #{tpu_custom_call.1} parent=1 // pred_region
      %1319 = dma.done [#allocation3], 128
    $region93: #{tpu_custom_call.1} parent=1 // pred_fallthru
      _
    %1320 = vsyncpa [#allocation3], 1

</llo_original>
